<compile_context>
chip_gen: v5e
topology: v5e:2x2
jax: 0.10.0
libtpu: 0.0.40
codegen_flags: <defaults>
</compile_context>

<pallas_src>
import math
import numpy as np

import jax
import jax.numpy as jnp
from jax import lax
from jax.experimental import pallas as pl
from jax.experimental.pallas import tpu as pltpu

# ----- small, deterministic configuration -----
B = 2
F_GRID, H_GRID, W_GRID = 2, 2, 2
L = F_GRID * H_GRID * W_GRID        # 8 tokens
L2 = 8                              # context length
DIM = 32
FFN_DIM = 64
NUM_HEADS = 4
HEAD_DIM = DIM // NUM_HEADS         # 8
HALF = HEAD_DIM // 2                # 4
EPS_LN = 1e-6
EPS_RMS = 1e-6
SCALE = 1.0 / math.sqrt(HEAD_DIM)

# ----- row layout of the packed "small vectors" input (slabs aligned to 8-row sublane tiles) ---
_R_MOD = 0                          # 6 rows : adaLN modulation table (rows 6..7 are padding)
_R_COS = 8                          # L rows : full-width cos ([cos|cos] per head)
_R_SIN = _R_COS + L                 # L rows : full-width signed sin ([-sin|+sin] per head)
_R_VEC = _R_SIN + L
(_BQ_A, _BQ_B, _NQ_A, _NQ_B,
 _BK_A, _BK_B, _NK_A, _NK_B,
 _BV, _BO,
 _CBQ, _CNQ, _CBK, _CNK, _CBV, _CBO,
 _B2) = range(_R_VEC, _R_VEC + 17)
N_VEC_ROWS = _R_VEC + 17            # 41


# ---------------- in-kernel helpers ----------------
def _layer_norm(x, eps=EPS_LN):
    mu = jnp.mean(x, axis=-1, keepdims=True)
    var = jnp.mean((x - mu) ** 2, axis=-1, keepdims=True)
    return (x - mu) * lax.rsqrt(var + eps)


def _gelu_tanh(x):
    c = math.sqrt(2.0 / math.pi)
    return 0.5 * x * (1.0 + jnp.tanh(c * (x + 0.044715 * x * x * x)))


def _softmax_rows(s):
    s = s - jnp.max(s, axis=-1, keepdims=True)
    p = jnp.exp(s)
    return p / jnp.sum(p, axis=-1, keepdims=True)       # exact normalisation


# ---------------- the fused kernel (grid over batch) ----------------
def wan_block_kernel(x_ref, e_ref, ctx_ref, vec_ref, w_ref, w1_ref, b1_ref, out_ref):
    Lv, Cv = x_ref.shape[1], x_ref.shape[2]
    L2v = ctx_ref.shape[1]
    Fv = w1_ref.shape[1]

    # --- slice-on-demand accessors: never materialise the whole packed arrays ---
    def vrow(i):                                  # (1, C) f32
        return vec_ref[i:i + 1, :]

    def wmat(i):                                  # (C, C) bf16, 32-row (16-aligned) slice
        return w_ref[i * Cv:(i + 1) * Cv, :]

    def lin(a_bf, w_bf, b_row):                   # bf16 matmul, f32 accumulate, f32 bias
        return jnp.dot(a_bf, w_bf, preferred_element_type=jnp.float32) + b_row

    def split_heads(t):                           # (L, C) f32 -> (H, L, D) bf16 (one relayout)
        return jnp.concatenate(
            [t[None, :, h * HEAD_DIM:(h + 1) * HEAD_DIM] for h in range(NUM_HEADS)],
            axis=0).astype(jnp.bfloat16)

    def merge_heads(t):                           # (H, L, D) f32 -> (L, C) f32
        return jnp.concatenate([t[h] for h in range(NUM_HEADS)], axis=-1)

    def mha(q_f32, k_f32, v_f32):
        qh, kh, vh = split_heads(q_f32), split_heads(k_f32), split_heads(v_f32)
        # single batched score contraction (head folded into batch dim) + single P@V
        s = jnp.einsum('hld,hmd->hlm', qh, kh, preferred_element_type=jnp.float32)
        p = _softmax_rows(s).astype(jnp.bfloat16)
        o = jnp.einsum('hlm,hmd->hld', p, vh, preferred_element_type=jnp.float32)
        return merge_heads(o)                     # (L, C) f32

    x = x_ref[0].astype(jnp.float32)              # (L, C)
    ctx = ctx_ref[0].astype(jnp.float32)          # (L2, C)

    # ----- adaLN modulation: (modulation + e).chunk(6) -----
    mod = vec_ref[_R_MOD:_R_MOD + 6, :]           # (6, C)
    e_mod = e_ref[0].astype(jnp.float32) + mod    # (6, C)
    e0, e1, e2, e3, e4, e5 = (e_mod[i:i + 1, :] for i in range(6))

    # ----- norm1 + mul_add_add -----
    h = _layer_norm(x) * (1.0 + e1) + e0
    h_bf = h.astype(jnp.bfloat16)

    # ----- self attention -----
    qa = lin(h_bf, wmat(0), vrow(_BQ_A))          # [re|im] per-head column layout
    qb = lin(h_bf, wmat(1), vrow(_BQ_B))          # rotate-half source: [im|re] per head
    ka = lin(h_bf, wmat(2), vrow(_BK_A))
    kb = lin(h_bf, wmat(3), vrow(_BK_B))
    v = lin(h_bf, wmat(4), vrow(_BV))

    rq = lax.rsqrt(jnp.mean(qa * qa, axis=-1, keepdims=True) + EPS_RMS)
    rk = lax.rsqrt(jnp.mean(ka * ka, axis=-1, keepdims=True) + EPS_RMS)
    # _NQ_* rows carry the RMSNorm weight with 1/sqrt(head_dim) folded in
    q_n = qa * rq * vrow(_NQ_A)
    q_h = qb * rq * vrow(_NQ_B)
    k_n = ka * rk * vrow(_NK_A)
    k_h = kb * rk * vrow(_NK_B)

    # full-width RoPE: q' = q*cos + rotate_half(q)*sin  (sign folded into the sin slab)
    cosf = vec_ref[_R_COS:_R_COS + Lv, :]
    sinf = vec_ref[_R_SIN:_R_SIN + Lv, :]
    q_rot = q_n * cosf + q_h * sinf
    k_rot = k_n * cosf + k_h * sinf

    attn = mha(q_rot, k_rot, v)                                   # (L, C)
    y = jnp.dot(attn.astype(jnp.bfloat16), wmat(5),
                preferred_element_type=jnp.float32) + vrow(_BO)   # full-width o-projection
    x1 = x + y * e2                                               # mul_add

    # ----- t2v cross attention (norm3 = Identity since cross_attn_norm=False) -----
    x1_bf = x1.astype(jnp.bfloat16)
    ctx_bf = ctx.astype(jnp.bfloat16)
    qc = lin(x1_bf, wmat(6), vrow(_CBQ))
    kc = lin(ctx_bf, wmat(7), vrow(_CBK))
    vc = lin(ctx_bf, wmat(8), vrow(_CBV))
    rqc = lax.rsqrt(jnp.mean(qc * qc, axis=-1, keepdims=True) + EPS_RMS)
    rkc = lax.rsqrt(jnp.mean(kc * kc, axis=-1, keepdims=True) + EPS_RMS)
    qc_n = qc * rqc * vrow(_CNQ)
    kc_n = kc * rkc * vrow(_CNK)

    attc = mha(qc_n, kc_n, vc)                                    # (L, C)
    z = jnp.dot(attc.astype(jnp.bfloat16), wmat(9),
                preferred_element_type=jnp.float32) + vrow(_CBO)
    x2 = x1 + z

    # ----- norm2 + mul_add_add + FFN (GELU-tanh) + mul_add -----
    hm = _layer_norm(x2) * (1.0 + e4) + e3
    g = jnp.dot(hm.astype(jnp.bfloat16), w1_ref[...],
                preferred_element_type=jnp.float32) + b1_ref[...]                # (L, FFN)
    g = _gelu_tanh(g)
    yf = jnp.dot(g.astype(jnp.bfloat16), w_ref[10 * Cv:10 * Cv + Fv, :],
                 preferred_element_type=jnp.float32) + vrow(_B2)                 # (L, C)
    x3 = x2 + yf * e5

    # lane-dense store: one (1, L*C) row per batch instead of a masked (L, 32) store
    row = jnp.concatenate([x3[l:l + 1, :] for l in range(Lv)], axis=-1)          # (1, L*C)
    out_ref[...] = row[None].astype(out_ref.dtype)                               # (1, 1, L*C)


# ---------------- wrapper ----------------
def _head_perms():
    # perm_a: per head [re(HALF), im(HALF)]   (de-interleave the RoPE complex pairs)
    # perm_b: per head [im(HALF), re(HALF)]   (rotate-half source)
    idx_a, idx_b = [], []
    for h in range(NUM_HEADS):
        ev = list(range(h * HEAD_DIM, (h + 1) * HEAD_DIM, 2))
        od = list(range(h * HEAD_DIM + 1, (h + 1) * HEAD_DIM, 2))
        idx_a += ev + od
        idx_b += od + ev
    return np.array(idx_a), np.array(idx_b)


def pack_params(p, cos, sin):
    """Host-side packing + device upload.  Call ONCE and reuse the returned arrays."""
    perm_a, perm_b = _head_perms()
    cos = np.asarray(cos, np.float32)               # (L, HALF)
    sin = np.asarray(sin, np.float32)
    cos_full = np.tile(np.concatenate([cos, cos], axis=-1), (1, NUM_HEADS))     # (L, DIM)
    sin_full = np.tile(np.concatenate([-sin, sin], axis=-1), (1, NUM_HEADS))    # (L, DIM)

    def row(v):
        return np.asarray(v, np.float32).reshape(1, -1)

    bq = np.asarray(p["bq"]); bk = np.asarray(p["bk"])
    nqw = np.asarray(p["nqw"]); nkw = np.asarray(p["nkw"])

    vec = np.concatenate([
        np.asarray(p["mod"], np.float32),            # 6 rows
        np.zeros((2, DIM), np.float32),              # pad to sublane-tile boundary
        cos_full, sin_full,                          # 2*L rows
        row(bq[perm_a]), row(bq[perm_b]),
        row(nqw[perm_a] * SCALE), row(nqw[perm_b] * SCALE),   # score scale folded into q norm
        row(bk[perm_a]), row(bk[perm_b]),
        row(nkw[perm_a]), row(nkw[perm_b]),
        row(p["bv"]), row(p["bo"]),
        row(p["cbq"]), row(np.asarray(p["cnqw"]) * SCALE),
        row(p["cbk"]), row(p["cnkw"]),
        row(p["cbv"]), row(p["cbo"]),
        row(p["b2"]),
    ], axis=0).astype(np.float32)
    assert vec.shape == (N_VEC_ROWS, DIM)

    wq = np.asarray(p["wq"]); wk = np.asarray(p["wk"])
    wpack = np.concatenate([
        wq[:, perm_a], wq[:, perm_b], wk[:, perm_a], wk[:, perm_b],
        np.asarray(p["wv"]), np.asarray(p["wo"]),
        np.asarray(p["cwq"]), np.asarray(p["cwk"]),
        np.asarray(p["cwv"]), np.asarray(p["cwo"]),
        np.asarray(p["w2"]),
    ], axis=0)
    assert wpack.shape == (10 * DIM + FFN_DIM, DIM)

    return (jnp.asarray(vec, jnp.float32),
            jnp.asarray(wpack, jnp.bfloat16),
            jnp.asarray(p["w1"], jnp.bfloat16),
            jnp.asarray(p["b1"], jnp.float32).reshape(1, -1))


def _cost_estimate(Bv, Lv, L2v, Cv, Fv):
    flops = 2 * (Bv * Lv * Cv * Cv * 6             # self: qa, qb, ka, kb, v, o
                 + Bv * Lv * Cv * Cv * 2           # cross: q, o
                 + Bv * L2v * Cv * Cv * 2          # cross: k, v
                 + Bv * Lv * Cv * Fv * 2           # ffn up/down
                 + Bv * NUM_HEADS * Lv * Lv * HEAD_DIM * 2
                 + Bv * NUM_HEADS * Lv * L2v * HEAD_DIM * 2)
    transcendentals = Bv * NUM_HEADS * Lv * (Lv + L2v) + Bv * Lv * Fv + Bv * Lv * 8
    bytes_accessed = (4 * (2 * Bv * Lv * Cv + Bv * 6 * Cv + Bv * L2v * Cv
                           + N_VEC_ROWS * Cv + Fv)
                      + 2 * ((10 * Cv + Fv) * Cv + Cv * Fv))
    return pl.CostEstimate(flops=int(flops), transcendentals=int(transcendentals),
                           bytes_accessed=int(bytes_accessed))


@jax.jit
def wan_attention_block_pallas(x, e, ctx, vec, wpack, w1, b1):
    Bv, Lv, Cv = x.shape
    L2v = ctx.shape[1]
    Fv = w1.shape[1]

    out = pl.pallas_call(
        wan_block_kernel,
        out_shape=jax.ShapeDtypeStruct((Bv, 1, Lv * Cv), jnp.float32),
        grid=(Bv,),
        in_specs=[
            pl.BlockSpec((1, Lv, Cv), lambda b: (b, 0, 0)),          # x
            pl.BlockSpec((1, 6, Cv), lambda b: (b, 0, 0)),           # e
            pl.BlockSpec((1, L2v, Cv), lambda b: (b, 0, 0)),         # context
            pl.BlockSpec((vec.shape[0], Cv), lambda b: (0, 0)),      # packed vectors (resident)
            pl.BlockSpec((wpack.shape[0], Cv), lambda b: (0, 0)),    # packed weights (resident)
            pl.BlockSpec((Cv, Fv), lambda b: (0, 0)),                # w1 (resident)
            pl.BlockSpec((1, Fv), lambda b: (0, 0)),                 # b1 (resident)
        ],
        out_specs=pl.BlockSpec((1, 1, Lv * Cv), lambda b: (b, 0, 0)),
        compiler_params=pltpu.CompilerParams(
            dimension_semantics=("parallel",),          # shard batch across v7x TensorCores
            vmem_limit_bytes=32 * 1024 * 1024),
        cost_estimate=_cost_estimate(Bv, Lv, L2v, Cv, Fv),
    )(x, e, ctx, vec, wpack, w1, b1)
    return out.reshape(Bv, Lv, Cv)


# ---------------- pure-JAX reference (PyTorch math; bf16 MXU operands, f32 accumulation) ----
def _bf(a):
    return a.astype(jnp.bfloat16).astype(jnp.float32)


def wan_attention_block_ref(x, e, ctx, cos, sin, p):
    x = x.astype(jnp.float32)
    em = p["mod"][None] + e
    ee = [em[:, i:i + 1, :] for i in range(6)]

    def ln(t):
        mu = t.mean(-1, keepdims=True)
        var = ((t - mu) ** 2).mean(-1, keepdims=True)
        return (t - mu) / jnp.sqrt(var + EPS_LN)

    def rms(t, w):
        return t * lax.rsqrt((t * t).mean(-1, keepdims=True) + EPS_RMS) * w

    def mm(a, b):      # bf16 operands, f32 accumulation — matches the kernel's MXU usage
        return jnp.dot(_bf(a), _bf(b), preferred_element_type=jnp.float32)

    Bv, Lv, Cv = x.shape
    L2v = ctx.shape[1]

    out = ln(x) * (1 + ee[1]) + ee[0]
    o2 = out.reshape(-1, Cv)
    q = rms(mm(o2, p["wq"]) + p["bq"], p["nqw"]).reshape(Bv, Lv, NUM_HEADS, HEAD_DIM)
    k = rms(mm(o2, p["wk"]) + p["bk"], p["nkw"]).reshape(Bv, Lv, NUM_HEADS, HEAD_DIM)
    v = (mm(o2, p["wv"]) + p["bv"]).reshape(Bv, Lv, NUM_HEADS, HEAD_DIM)

    def rope(t):
        tr = t.reshape(Bv, Lv, NUM_HEADS, HALF, 2)
        re, im = tr[..., 0], tr[..., 1]
        cb, sb = cos[None, :, None, :], sin[None, :, None, :]
        return jnp.stack([re * cb - im * sb, re * sb + im * cb], axis=-1).reshape(
            Bv, Lv, NUM_HEADS, HEAD_DIM)

    q = rope(q) * SCALE
    k = rope(k)
    s = jnp.einsum("blnd,bmnd->bnlm", _bf(q), _bf(k), preferred_element_type=jnp.float32)
    a = jnp.einsum("bnlm,bmnd->blnd", _bf(jax.nn.softmax(s, -1)), _bf(v),
                   preferred_element_type=jnp.float32).reshape(Bv, Lv, Cv)
    y = (mm(a.reshape(-1, Cv), p["wo"]) + p["bo"]).reshape(Bv, Lv, Cv)
    x1 = x + y * ee[2]

    x12 = x1.reshape(-1, Cv)
    c2 = ctx.reshape(-1, Cv)
    qc = (rms(mm(x12, p["cwq"]) + p["cbq"], p["cnqw"]) * SCALE).reshape(
        Bv, Lv, NUM_HEADS, HEAD_DIM)
    kc = rms(mm(c2, p["cwk"]) + p["cbk"], p["cnkw"]).reshape(Bv, L2v, NUM_HEADS, HEAD_DIM)
    vc = (mm(c2, p["cwv"]) + p["cbv"]).reshape(Bv, L2v, NUM_HEADS, HEAD_DIM)
    s = jnp.einsum("blnd,bmnd->bnlm", _bf(qc), _bf(kc), preferred_element_type=jnp.float32)
    a = jnp.einsum("bnlm,bmnd->blnd", _bf(jax.nn.softmax(s, -1)), _bf(vc),
                   preferred_element_type=jnp.float32).reshape(Bv, Lv, Cv)
    x2 = x1 + (mm(a.reshape(-1, Cv), p["cwo"]) + p["cbo"]).reshape(Bv, Lv, Cv)

    hm = ln(x2) * (1 + ee[4]) + ee[3]
    g = mm(hm.reshape(-1, Cv), p["w1"]) + p["b1"]
    g = 0.5 * g * (1 + jnp.tanh(math.sqrt(2 / math.pi) * (g + 0.044715 * g ** 3)))
    yf = (mm(g, p["w2"]) + p["b2"]).reshape(Bv, Lv, Cv)
    return x2 + yf * ee[5]


# ---------------- deterministic parameter / RoPE-table construction ----------------
def init_params(key):
    ks = jax.random.split(key, 12)

    def lin(k, fin, fout):
        k1, k2 = jax.random.split(k)
        w = jax.random.normal(k1, (fin, fout), jnp.float32) / math.sqrt(fin)
        b = jax.random.normal(k2, (fout,), jnp.float32) * 0.02
        return w, b

    p = {}
    p["wq"], p["bq"] = lin(ks[0], DIM, DIM)
    p["wk"], p["bk"] = lin(ks[1], DIM, DIM)
    p["wv"], p["bv"] = lin(ks[2], DIM, DIM)
    p["wo"], p["bo"] = lin(ks[3], DIM, DIM)
    p["nqw"] = jnp.ones((DIM,), jnp.float32)
    p["nkw"] = jnp.ones((DIM,), jnp.float32)
    p["cwq"], p["cbq"] = lin(ks[4], DIM, DIM)
    p["cwk"], p["cbk"] = lin(ks[5], DIM, DIM)
    p["cwv"], p["cbv"] = lin(ks[6], DIM, DIM)
    p["cwo"], p["cbo"] = lin(ks[7], DIM, DIM)
    p["cnqw"] = jnp.ones((DIM,), jnp.float32)
    p["cnkw"] = jnp.ones((DIM,), jnp.float32)
    p["w1"], p["b1"] = lin(ks[8], DIM, FFN_DIM)
    p["w2"], p["b2"] = lin(ks[9], FFN_DIM, DIM)
    p["mod"] = jax.random.normal(ks[10], (6, DIM), jnp.float32) / math.sqrt(DIM)
    return p


def make_rope_tables(f, h, w):
    c = HALF
    c_f, c_h, c_w = c - 2 * (c // 3), c // 3, c // 3

    def angles(max_len, num):
        if num == 0:
            return np.zeros((max_len, 0), np.float64)
        inv = 1.0 / (10000.0 ** (np.arange(num, dtype=np.float64) / num))
        return np.outer(np.arange(max_len, dtype=np.float64), inv)

    af, ah, aw = angles(1024, c_f), angles(1024, c_h), angles(1024, c_w)
    fi, hi, wi = np.meshgrid(np.arange(f), np.arange(h), np.arange(w), indexing="ij")
    fi, hi, wi = fi.reshape(-1), hi.reshape(-1), wi.reshape(-1)
    ang = np.concatenate([af[fi], ah[hi], aw[wi]], axis=-1)     # (L, HALF)
    return (jnp.asarray(np.cos(ang), jnp.float32),
            jnp.asarray(np.sin(ang), jnp.float32))


if __name__ == "__main__":
    key = jax.random.PRNGKey(0)
    kx, ke, kc, kp = jax.random.split(key, 4)
    x = jax.random.normal(kx, (B, L, DIM), jnp.float32)
    e = jax.random.normal(ke, (B, 6, DIM), jnp.float32)
    ctx = jax.random.normal(kc, (B, L2, DIM), jnp.float32)
    cos, sin = make_rope_tables(F_GRID, H_GRID, W_GRID)
    params = init_params(kp)

    # one-time host-side packing + H2D upload; the jitted wrapper reuses these device arrays
    packed = pack_params(params, cos, sin)

    out = wan_attention_block_pallas(x, e, ctx, *packed)
    out = jax.block_until_ready(out)

    ref = wan_attention_block_ref(x, e, ctx, cos, sin, params)
    assert out.shape == (B, L, DIM)
    assert np.isfinite(np.asarray(out)).all()
    err = float(np.max(np.abs(np.asarray(out) - np.asarray(ref))))
    assert err < 5e-2, f"kernel/reference mismatch: max abs err = {err}"
    print("KERNEL_OK")
</pallas_src>

<mosaic_0001>
module attributes {stable_mosaic.version = 11 : i64} {
  func.func @wan_block_kernel(%arg0: i32, %arg1: memref<1x8x32xf32, #tpu.memory_space<vmem>>, %arg2: memref<1x6x32xf32, #tpu.memory_space<vmem>>, %arg3: memref<1x8x32xf32, #tpu.memory_space<vmem>>, %arg4: memref<41x32xf32, #tpu.memory_space<vmem>>, %arg5: memref<384x32xbf16, #tpu.memory_space<vmem>>, %arg6: memref<32x64xbf16, #tpu.memory_space<vmem>>, %arg7: memref<1x64xf32, #tpu.memory_space<vmem>>, %arg8: memref<1x1x256xf32, #tpu.memory_space<vmem>>) attributes {dimension_semantics = [#tpu.dimension_semantics<parallel>], iteration_bounds = array<i64: 2>, scalar_prefetch = 0 : i64, scratch_operands = 0 : i64, tpu.core_type = #tpu.core_type<tc>, window_params = [{transform_indices = @transform_0, window_bounds = array<i64: 1, 8, 32>}, {transform_indices = @transform_1, window_bounds = array<i64: 1, 6, 32>}, {transform_indices = @transform_2, window_bounds = array<i64: 1, 8, 32>}, {pipeline_mode = #tpu.pipeline_mode<synchronous>, transform_indices = @transform_3, window_bounds = array<i64: 41, 32>}, {pipeline_mode = #tpu.pipeline_mode<synchronous>, transform_indices = @transform_4, window_bounds = array<i64: 384, 32>}, {pipeline_mode = #tpu.pipeline_mode<synchronous>, transform_indices = @transform_5, window_bounds = array<i64: 32, 64>}, {pipeline_mode = #tpu.pipeline_mode<synchronous>, transform_indices = @transform_6, window_bounds = array<i64: 1, 64>}, {transform_indices = @transform_7, window_bounds = array<i64: 1, 1, 256>}]} {
    %c0 = arith.constant 0 : index
    %c0_0 = arith.constant 0 : index
    %c0_1 = arith.constant 0 : index
    %0 = vector.load %arg1[%c0, %c0_0, %c0_1] : memref<1x8x32xf32, #tpu.memory_space<vmem>>, vector<1x8x32xf32>
    %1 = vector.shape_cast %0 : vector<1x8x32xf32> to vector<8x32xf32>
    %c0_2 = arith.constant 0 : index
    %c0_3 = arith.constant 0 : index
    %c0_4 = arith.constant 0 : index
    %2 = vector.load %arg3[%c0_2, %c0_3, %c0_4] : memref<1x8x32xf32, #tpu.memory_space<vmem>>, vector<1x8x32xf32>
    %3 = vector.shape_cast %2 : vector<1x8x32xf32> to vector<8x32xf32>
    %c0_5 = arith.constant 0 : index
    %c0_6 = arith.constant 0 : index
    %4 = vector.load %arg4[%c0_5, %c0_6] : memref<41x32xf32, #tpu.memory_space<vmem>>, vector<6x32xf32>
    %c0_7 = arith.constant 0 : index
    %c0_8 = arith.constant 0 : index
    %c0_9 = arith.constant 0 : index
    %5 = vector.load %arg2[%c0_7, %c0_8, %c0_9] : memref<1x6x32xf32, #tpu.memory_space<vmem>>, vector<1x6x32xf32>
    %6 = vector.shape_cast %5 : vector<1x6x32xf32> to vector<6x32xf32>
    %7 = arith.addf %6, %4 : vector<6x32xf32>
    %8 = vector.extract_strided_slice %7 {offsets = [0, 0], sizes = [1, 32], strides = [1, 1]} : vector<6x32xf32> to vector<1x32xf32>
    %9 = vector.extract_strided_slice %7 {offsets = [1, 0], sizes = [1, 32], strides = [1, 1]} : vector<6x32xf32> to vector<1x32xf32>
    %10 = vector.extract_strided_slice %7 {offsets = [2, 0], sizes = [1, 32], strides = [1, 1]} : vector<6x32xf32> to vector<1x32xf32>
    %11 = vector.extract_strided_slice %7 {offsets = [3, 0], sizes = [1, 32], strides = [1, 1]} : vector<6x32xf32> to vector<1x32xf32>
    %12 = vector.extract_strided_slice %7 {offsets = [4, 0], sizes = [1, 32], strides = [1, 1]} : vector<6x32xf32> to vector<1x32xf32>
    %13 = vector.extract_strided_slice %7 {offsets = [5, 0], sizes = [1, 32], strides = [1, 1]} : vector<6x32xf32> to vector<1x32xf32>
    %cst = arith.constant dense<0.000000e+00> : vector<8xf32>
    %14 = vector.multi_reduction <add>, %1, %cst [1] : vector<8x32xf32> to vector<8xf32>
    %15 = vector.shape_cast %14 : vector<8xf32> to vector<8x1xf32>
    %cst_10 = arith.constant 3.200000e+01 : f32
    %16 = vector.broadcast %cst_10 : f32 to vector<8x1xf32>
    %17 = arith.divf %15, %16 : vector<8x1xf32>
    %18 = vector.broadcast %17 : vector<8x1xf32> to vector<8x32xf32>
    %19 = arith.subf %1, %18 : vector<8x32xf32>
    %20 = arith.mulf %19, %19 : vector<8x32xf32>
    %cst_11 = arith.constant dense<0.000000e+00> : vector<8xf32>
    %21 = vector.multi_reduction <add>, %20, %cst_11 [1] : vector<8x32xf32> to vector<8xf32>
    %22 = vector.shape_cast %21 : vector<8xf32> to vector<8x1xf32>
    %cst_12 = arith.constant 3.200000e+01 : f32
    %23 = vector.broadcast %cst_12 : f32 to vector<8x1xf32>
    %24 = arith.divf %22, %23 : vector<8x1xf32>
    %25 = vector.broadcast %17 : vector<8x1xf32> to vector<8x32xf32>
    %26 = arith.subf %1, %25 : vector<8x32xf32>
    %cst_13 = arith.constant 9.99999997E-7 : f32
    %27 = vector.broadcast %cst_13 : f32 to vector<8x1xf32>
    %28 = arith.addf %24, %27 : vector<8x1xf32>
    %29 = math.rsqrt %28 : vector<8x1xf32>
    %30 = vector.broadcast %29 : vector<8x1xf32> to vector<8x32xf32>
    %31 = arith.mulf %26, %30 : vector<8x32xf32>
    %cst_14 = arith.constant 1.000000e+00 : f32
    %32 = vector.broadcast %cst_14 : f32 to vector<1x32xf32>
    %33 = arith.addf %32, %9 : vector<1x32xf32>
    %34 = vector.broadcast %33 : vector<1x32xf32> to vector<8x32xf32>
    %35 = arith.mulf %31, %34 : vector<8x32xf32>
    %36 = vector.broadcast %8 : vector<1x32xf32> to vector<8x32xf32>
    %37 = arith.addf %35, %36 : vector<8x32xf32>
    %38 = arith.truncf %37 : vector<8x32xf32> to vector<8x32xbf16>
    %c0_15 = arith.constant 0 : index
    %c0_16 = arith.constant 0 : index
    %39 = vector.load %arg5[%c0_15, %c0_16] : memref<384x32xbf16, #tpu.memory_space<vmem>>, vector<32x32xbf16>
    %c24 = arith.constant 24 : index
    %c0_17 = arith.constant 0 : index
    %40 = vector.load %arg4[%c24, %c0_17] : memref<41x32xf32, #tpu.memory_space<vmem>>, vector<1x32xf32>
    %cst_18 = arith.constant dense<0.000000e+00> : vector<8x32xf32>
    %41 = tpu.matmul %38, %39, %cst_18 {dimension_numbers = #tpu.dot_dimension_numbers<[1], [0], [0], [1], [0, 0, 1, 1], [], []>} : vector<8x32xbf16>, vector<32x32xbf16>, vector<8x32xf32> -> vector<8x32xf32>
    %42 = vector.broadcast %40 : vector<1x32xf32> to vector<8x32xf32>
    %43 = arith.addf %41, %42 : vector<8x32xf32>
    %c32 = arith.constant 32 : index
    %c0_19 = arith.constant 0 : index
    %44 = vector.load %arg5[%c32, %c0_19] : memref<384x32xbf16, #tpu.memory_space<vmem>>, vector<32x32xbf16>
    %c25 = arith.constant 25 : index
    %c0_20 = arith.constant 0 : index
    %45 = vector.load %arg4[%c25, %c0_20] : memref<41x32xf32, #tpu.memory_space<vmem>>, vector<1x32xf32>
    %cst_21 = arith.constant dense<0.000000e+00> : vector<8x32xf32>
    %46 = tpu.matmul %38, %44, %cst_21 {dimension_numbers = #tpu.dot_dimension_numbers<[1], [0], [0], [1], [0, 0, 1, 1], [], []>} : vector<8x32xbf16>, vector<32x32xbf16>, vector<8x32xf32> -> vector<8x32xf32>
    %47 = vector.broadcast %45 : vector<1x32xf32> to vector<8x32xf32>
    %48 = arith.addf %46, %47 : vector<8x32xf32>
    %c64 = arith.constant 64 : index
    %c0_22 = arith.constant 0 : index
    %49 = vector.load %arg5[%c64, %c0_22] : memref<384x32xbf16, #tpu.memory_space<vmem>>, vector<32x32xbf16>
    %c28 = arith.constant 28 : index
    %c0_23 = arith.constant 0 : index
    %50 = vector.load %arg4[%c28, %c0_23] : memref<41x32xf32, #tpu.memory_space<vmem>>, vector<1x32xf32>
    %cst_24 = arith.constant dense<0.000000e+00> : vector<8x32xf32>
    %51 = tpu.matmul %38, %49, %cst_24 {dimension_numbers = #tpu.dot_dimension_numbers<[1], [0], [0], [1], [0, 0, 1, 1], [], []>} : vector<8x32xbf16>, vector<32x32xbf16>, vector<8x32xf32> -> vector<8x32xf32>
    %52 = vector.broadcast %50 : vector<1x32xf32> to vector<8x32xf32>
    %53 = arith.addf %51, %52 : vector<8x32xf32>
    %c96 = arith.constant 96 : index
    %c0_25 = arith.constant 0 : index
    %54 = vector.load %arg5[%c96, %c0_25] : memref<384x32xbf16, #tpu.memory_space<vmem>>, vector<32x32xbf16>
    %c29 = arith.constant 29 : index
    %c0_26 = arith.constant 0 : index
    %55 = vector.load %arg4[%c29, %c0_26] : memref<41x32xf32, #tpu.memory_space<vmem>>, vector<1x32xf32>
    %cst_27 = arith.constant dense<0.000000e+00> : vector<8x32xf32>
    %56 = tpu.matmul %38, %54, %cst_27 {dimension_numbers = #tpu.dot_dimension_numbers<[1], [0], [0], [1], [0, 0, 1, 1], [], []>} : vector<8x32xbf16>, vector<32x32xbf16>, vector<8x32xf32> -> vector<8x32xf32>
    %57 = vector.broadcast %55 : vector<1x32xf32> to vector<8x32xf32>
    %58 = arith.addf %56, %57 : vector<8x32xf32>
    %c128 = arith.constant 128 : index
    %c0_28 = arith.constant 0 : index
    %59 = vector.load %arg5[%c128, %c0_28] : memref<384x32xbf16, #tpu.memory_space<vmem>>, vector<32x32xbf16>
    %c32_29 = arith.constant 32 : index
    %c0_30 = arith.constant 0 : index
    %60 = vector.load %arg4[%c32_29, %c0_30] : memref<41x32xf32, #tpu.memory_space<vmem>>, vector<1x32xf32>
    %cst_31 = arith.constant dense<0.000000e+00> : vector<8x32xf32>
    %61 = tpu.matmul %38, %59, %cst_31 {dimension_numbers = #tpu.dot_dimension_numbers<[1], [0], [0], [1], [0, 0, 1, 1], [], []>} : vector<8x32xbf16>, vector<32x32xbf16>, vector<8x32xf32> -> vector<8x32xf32>
    %62 = vector.broadcast %60 : vector<1x32xf32> to vector<8x32xf32>
    %63 = arith.addf %61, %62 : vector<8x32xf32>
    %64 = arith.mulf %43, %43 : vector<8x32xf32>
    %cst_32 = arith.constant dense<0.000000e+00> : vector<8xf32>
    %65 = vector.multi_reduction <add>, %64, %cst_32 [1] : vector<8x32xf32> to vector<8xf32>
    %66 = vector.shape_cast %65 : vector<8xf32> to vector<8x1xf32>
    %cst_33 = arith.constant 3.200000e+01 : f32
    %67 = vector.broadcast %cst_33 : f32 to vector<8x1xf32>
    %68 = arith.divf %66, %67 : vector<8x1xf32>
    %cst_34 = arith.constant 9.99999997E-7 : f32
    %69 = vector.broadcast %cst_34 : f32 to vector<8x1xf32>
    %70 = arith.addf %68, %69 : vector<8x1xf32>
    %71 = math.rsqrt %70 : vector<8x1xf32>
    %72 = arith.mulf %53, %53 : vector<8x32xf32>
    %cst_35 = arith.constant dense<0.000000e+00> : vector<8xf32>
    %73 = vector.multi_reduction <add>, %72, %cst_35 [1] : vector<8x32xf32> to vector<8xf32>
    %74 = vector.shape_cast %73 : vector<8xf32> to vector<8x1xf32>
    %cst_36 = arith.constant 3.200000e+01 : f32
    %75 = vector.broadcast %cst_36 : f32 to vector<8x1xf32>
    %76 = arith.divf %74, %75 : vector<8x1xf32>
    %cst_37 = arith.constant 9.99999997E-7 : f32
    %77 = vector.broadcast %cst_37 : f32 to vector<8x1xf32>
    %78 = arith.addf %76, %77 : vector<8x1xf32>
    %79 = math.rsqrt %78 : vector<8x1xf32>
    %80 = vector.broadcast %71 : vector<8x1xf32> to vector<8x32xf32>
    %81 = arith.mulf %43, %80 : vector<8x32xf32>
    %c26 = arith.constant 26 : index
    %c0_38 = arith.constant 0 : index
    %82 = vector.load %arg4[%c26, %c0_38] : memref<41x32xf32, #tpu.memory_space<vmem>>, vector<1x32xf32>
    %83 = vector.broadcast %82 : vector<1x32xf32> to vector<8x32xf32>
    %84 = arith.mulf %81, %83 : vector<8x32xf32>
    %85 = vector.broadcast %71 : vector<8x1xf32> to vector<8x32xf32>
    %86 = arith.mulf %48, %85 : vector<8x32xf32>
    %c27 = arith.constant 27 : index
    %c0_39 = arith.constant 0 : index
    %87 = vector.load %arg4[%c27, %c0_39] : memref<41x32xf32, #tpu.memory_space<vmem>>, vector<1x32xf32>
    %88 = vector.broadcast %87 : vector<1x32xf32> to vector<8x32xf32>
    %89 = arith.mulf %86, %88 : vector<8x32xf32>
    %90 = vector.broadcast %79 : vector<8x1xf32> to vector<8x32xf32>
    %91 = arith.mulf %53, %90 : vector<8x32xf32>
    %c30 = arith.constant 30 : index
    %c0_40 = arith.constant 0 : index
    %92 = vector.load %arg4[%c30, %c0_40] : memref<41x32xf32, #tpu.memory_space<vmem>>, vector<1x32xf32>
    %93 = vector.broadcast %92 : vector<1x32xf32> to vector<8x32xf32>
    %94 = arith.mulf %91, %93 : vector<8x32xf32>
    %95 = vector.broadcast %79 : vector<8x1xf32> to vector<8x32xf32>
    %96 = arith.mulf %58, %95 : vector<8x32xf32>
    %c31 = arith.constant 31 : index
    %c0_41 = arith.constant 0 : index
    %97 = vector.load %arg4[%c31, %c0_41] : memref<41x32xf32, #tpu.memory_space<vmem>>, vector<1x32xf32>
    %98 = vector.broadcast %97 : vector<1x32xf32> to vector<8x32xf32>
    %99 = arith.mulf %96, %98 : vector<8x32xf32>
    %c8 = arith.constant 8 : index
    %c0_42 = arith.constant 0 : index
    %100 = vector.load %arg4[%c8, %c0_42] : memref<41x32xf32, #tpu.memory_space<vmem>>, vector<8x32xf32>
    %c16 = arith.constant 16 : index
    %c0_43 = arith.constant 0 : index
    %101 = vector.load %arg4[%c16, %c0_43] : memref<41x32xf32, #tpu.memory_space<vmem>>, vector<8x32xf32>
    %102 = arith.mulf %84, %100 : vector<8x32xf32>
    %103 = arith.mulf %89, %101 : vector<8x32xf32>
    %104 = arith.addf %102, %103 : vector<8x32xf32>
    %105 = arith.mulf %94, %100 : vector<8x32xf32>
    %106 = arith.mulf %99, %101 : vector<8x32xf32>
    %107 = arith.addf %105, %106 : vector<8x32xf32>
    %108 = vector.extract_strided_slice %104 {offsets = [0, 0], sizes = [8, 8], strides = [1, 1]} : vector<8x32xf32> to vector<8x8xf32>
    %109 = vector.shape_cast %108 : vector<8x8xf32> to vector<1x8x8xf32>
    %110 = vector.extract_strided_slice %104 {offsets = [0, 8], sizes = [8, 8], strides = [1, 1]} : vector<8x32xf32> to vector<8x8xf32>
    %111 = vector.shape_cast %110 : vector<8x8xf32> to vector<1x8x8xf32>
    %112 = vector.extract_strided_slice %104 {offsets = [0, 16], sizes = [8, 8], strides = [1, 1]} : vector<8x32xf32> to vector<8x8xf32>
    %113 = vector.shape_cast %112 : vector<8x8xf32> to vector<1x8x8xf32>
    %114 = vector.extract_strided_slice %104 {offsets = [0, 24], sizes = [8, 8], strides = [1, 1]} : vector<8x32xf32> to vector<8x8xf32>
    %115 = vector.shape_cast %114 : vector<8x8xf32> to vector<1x8x8xf32>
    %116 = tpu.concatenate %109, %111, %113, %115 in 0 : vector<1x8x8xf32>, vector<1x8x8xf32>, vector<1x8x8xf32>, vector<1x8x8xf32> -> vector<4x8x8xf32>
    %117 = arith.truncf %116 : vector<4x8x8xf32> to vector<4x8x8xbf16>
    %118 = vector.extract_strided_slice %107 {offsets = [0, 0], sizes = [8, 8], strides = [1, 1]} : vector<8x32xf32> to vector<8x8xf32>
    %119 = vector.shape_cast %118 : vector<8x8xf32> to vector<1x8x8xf32>
    %120 = vector.extract_strided_slice %107 {offsets = [0, 8], sizes = [8, 8], strides = [1, 1]} : vector<8x32xf32> to vector<8x8xf32>
    %121 = vector.shape_cast %120 : vector<8x8xf32> to vector<1x8x8xf32>
    %122 = vector.extract_strided_slice %107 {offsets = [0, 16], sizes = [8, 8], strides = [1, 1]} : vector<8x32xf32> to vector<8x8xf32>
    %123 = vector.shape_cast %122 : vector<8x8xf32> to vector<1x8x8xf32>
    %124 = vector.extract_strided_slice %107 {offsets = [0, 24], sizes = [8, 8], strides = [1, 1]} : vector<8x32xf32> to vector<8x8xf32>
    %125 = vector.shape_cast %124 : vector<8x8xf32> to vector<1x8x8xf32>
    %126 = tpu.concatenate %119, %121, %123, %125 in 0 : vector<1x8x8xf32>, vector<1x8x8xf32>, vector<1x8x8xf32>, vector<1x8x8xf32> -> vector<4x8x8xf32>
    %127 = arith.truncf %126 : vector<4x8x8xf32> to vector<4x8x8xbf16>
    %128 = vector.extract_strided_slice %63 {offsets = [0, 0], sizes = [8, 8], strides = [1, 1]} : vector<8x32xf32> to vector<8x8xf32>
    %129 = vector.shape_cast %128 : vector<8x8xf32> to vector<1x8x8xf32>
    %130 = vector.extract_strided_slice %63 {offsets = [0, 8], sizes = [8, 8], strides = [1, 1]} : vector<8x32xf32> to vector<8x8xf32>
    %131 = vector.shape_cast %130 : vector<8x8xf32> to vector<1x8x8xf32>
    %132 = vector.extract_strided_slice %63 {offsets = [0, 16], sizes = [8, 8], strides = [1, 1]} : vector<8x32xf32> to vector<8x8xf32>
    %133 = vector.shape_cast %132 : vector<8x8xf32> to vector<1x8x8xf32>
    %134 = vector.extract_strided_slice %63 {offsets = [0, 24], sizes = [8, 8], strides = [1, 1]} : vector<8x32xf32> to vector<8x8xf32>
    %135 = vector.shape_cast %134 : vector<8x8xf32> to vector<1x8x8xf32>
    %136 = tpu.concatenate %129, %131, %133, %135 in 0 : vector<1x8x8xf32>, vector<1x8x8xf32>, vector<1x8x8xf32>, vector<1x8x8xf32> -> vector<4x8x8xf32>
    %137 = arith.truncf %136 : vector<4x8x8xf32> to vector<4x8x8xbf16>
    "tpu.trace_start"() <{level = 10 : i32, message = "hld,hmd->hlm"}> : () -> ()
    %cst_44 = arith.constant dense<0.000000e+00> : vector<4x8x8xf32>
    %138 = tpu.matmul %117, %127, %cst_44 {dimension_numbers = #tpu.dot_dimension_numbers<[2], [2], [1], [1], [0, 0, 0, 1, 1, 1], [0], [0]>} : vector<4x8x8xbf16>, vector<4x8x8xbf16>, vector<4x8x8xf32> -> vector<4x8x8xf32>
    "tpu.trace_stop"() : () -> ()
    %cst_45 = arith.constant dense<0xFF800000> : vector<4x8xf32>
    %139 = vector.multi_reduction <maximumf>, %138, %cst_45 [2] : vector<4x8x8xf32> to vector<4x8xf32>
    %140 = vector.shape_cast %139 : vector<4x8xf32> to vector<4x8x1xf32>
    %141 = vector.broadcast %140 : vector<4x8x1xf32> to vector<4x8x8xf32>
    %142 = arith.subf %138, %141 : vector<4x8x8xf32>
    %143 = math.exp %142 : vector<4x8x8xf32>
    %cst_46 = arith.constant dense<0.000000e+00> : vector<4x8xf32>
    %144 = vector.multi_reduction <add>, %143, %cst_46 [2] : vector<4x8x8xf32> to vector<4x8xf32>
    %145 = vector.shape_cast %144 : vector<4x8xf32> to vector<4x8x1xf32>
    %146 = vector.broadcast %145 : vector<4x8x1xf32> to vector<4x8x8xf32>
    %147 = arith.divf %143, %146 : vector<4x8x8xf32>
    %148 = arith.truncf %147 : vector<4x8x8xf32> to vector<4x8x8xbf16>
    "tpu.trace_start"() <{level = 10 : i32, message = "hlm,hmd->hld"}> : () -> ()
    %cst_47 = arith.constant dense<0.000000e+00> : vector<4x8x8xf32>
    %149 = tpu.matmul %148, %137, %cst_47 {dimension_numbers = #tpu.dot_dimension_numbers<[2], [1], [1], [2], [0, 0, 0, 1, 1, 2], [0], [0]>} : vector<4x8x8xbf16>, vector<4x8x8xbf16>, vector<4x8x8xf32> -> vector<4x8x8xf32>
    "tpu.trace_stop"() : () -> ()
    %150 = vector.extract_strided_slice %149 {offsets = [0, 0, 0], sizes = [1, 8, 8], strides = [1, 1, 1]} : vector<4x8x8xf32> to vector<1x8x8xf32>
    %151 = vector.shape_cast %150 : vector<1x8x8xf32> to vector<8x8xf32>
    %152 = vector.extract_strided_slice %149 {offsets = [1, 0, 0], sizes = [1, 8, 8], strides = [1, 1, 1]} : vector<4x8x8xf32> to vector<1x8x8xf32>
    %153 = vector.shape_cast %152 : vector<1x8x8xf32> to vector<8x8xf32>
    %154 = vector.extract_strided_slice %149 {offsets = [2, 0, 0], sizes = [1, 8, 8], strides = [1, 1, 1]} : vector<4x8x8xf32> to vector<1x8x8xf32>
    %155 = vector.shape_cast %154 : vector<1x8x8xf32> to vector<8x8xf32>
    %156 = vector.extract_strided_slice %149 {offsets = [3, 0, 0], sizes = [1, 8, 8], strides = [1, 1, 1]} : vector<4x8x8xf32> to vector<1x8x8xf32>
    %157 = vector.shape_cast %156 : vector<1x8x8xf32> to vector<8x8xf32>
    %158 = tpu.concatenate %151, %153, %155, %157 in 1 : vector<8x8xf32>, vector<8x8xf32>, vector<8x8xf32>, vector<8x8xf32> -> vector<8x32xf32>
    %159 = arith.truncf %158 : vector<8x32xf32> to vector<8x32xbf16>
    %c160 = arith.constant 160 : index
    %c0_48 = arith.constant 0 : index
    %160 = vector.load %arg5[%c160, %c0_48] : memref<384x32xbf16, #tpu.memory_space<vmem>>, vector<32x32xbf16>
    %cst_49 = arith.constant dense<0.000000e+00> : vector<8x32xf32>
    %161 = tpu.matmul %159, %160, %cst_49 {dimension_numbers = #tpu.dot_dimension_numbers<[1], [0], [0], [1], [0, 0, 1, 1], [], []>} : vector<8x32xbf16>, vector<32x32xbf16>, vector<8x32xf32> -> vector<8x32xf32>
    %c33 = arith.constant 33 : index
    %c0_50 = arith.constant 0 : index
    %162 = vector.load %arg4[%c33, %c0_50] : memref<41x32xf32, #tpu.memory_space<vmem>>, vector<1x32xf32>
    %163 = vector.broadcast %162 : vector<1x32xf32> to vector<8x32xf32>
    %164 = arith.addf %161, %163 : vector<8x32xf32>
    %165 = vector.broadcast %10 : vector<1x32xf32> to vector<8x32xf32>
    %166 = arith.mulf %164, %165 : vector<8x32xf32>
    %167 = arith.addf %1, %166 : vector<8x32xf32>
    %168 = arith.truncf %167 : vector<8x32xf32> to vector<8x32xbf16>
    %169 = arith.truncf %3 : vector<8x32xf32> to vector<8x32xbf16>
    %c192 = arith.constant 192 : index
    %c0_51 = arith.constant 0 : index
    %170 = vector.load %arg5[%c192, %c0_51] : memref<384x32xbf16, #tpu.memory_space<vmem>>, vector<32x32xbf16>
    %c34 = arith.constant 34 : index
    %c0_52 = arith.constant 0 : index
    %171 = vector.load %arg4[%c34, %c0_52] : memref<41x32xf32, #tpu.memory_space<vmem>>, vector<1x32xf32>
    %cst_53 = arith.constant dense<0.000000e+00> : vector<8x32xf32>
    %172 = tpu.matmul %168, %170, %cst_53 {dimension_numbers = #tpu.dot_dimension_numbers<[1], [0], [0], [1], [0, 0, 1, 1], [], []>} : vector<8x32xbf16>, vector<32x32xbf16>, vector<8x32xf32> -> vector<8x32xf32>
    %173 = vector.broadcast %171 : vector<1x32xf32> to vector<8x32xf32>
    %174 = arith.addf %172, %173 : vector<8x32xf32>
    %c224 = arith.constant 224 : index
    %c0_54 = arith.constant 0 : index
    %175 = vector.load %arg5[%c224, %c0_54] : memref<384x32xbf16, #tpu.memory_space<vmem>>, vector<32x32xbf16>
    %c36 = arith.constant 36 : index
    %c0_55 = arith.constant 0 : index
    %176 = vector.load %arg4[%c36, %c0_55] : memref<41x32xf32, #tpu.memory_space<vmem>>, vector<1x32xf32>
    %cst_56 = arith.constant dense<0.000000e+00> : vector<8x32xf32>
    %177 = tpu.matmul %169, %175, %cst_56 {dimension_numbers = #tpu.dot_dimension_numbers<[1], [0], [0], [1], [0, 0, 1, 1], [], []>} : vector<8x32xbf16>, vector<32x32xbf16>, vector<8x32xf32> -> vector<8x32xf32>
    %178 = vector.broadcast %176 : vector<1x32xf32> to vector<8x32xf32>
    %179 = arith.addf %177, %178 : vector<8x32xf32>
    %c256 = arith.constant 256 : index
    %c0_57 = arith.constant 0 : index
    %180 = vector.load %arg5[%c256, %c0_57] : memref<384x32xbf16, #tpu.memory_space<vmem>>, vector<32x32xbf16>
    %c38 = arith.constant 38 : index
    %c0_58 = arith.constant 0 : index
    %181 = vector.load %arg4[%c38, %c0_58] : memref<41x32xf32, #tpu.memory_space<vmem>>, vector<1x32xf32>
    %cst_59 = arith.constant dense<0.000000e+00> : vector<8x32xf32>
    %182 = tpu.matmul %169, %180, %cst_59 {dimension_numbers = #tpu.dot_dimension_numbers<[1], [0], [0], [1], [0, 0, 1, 1], [], []>} : vector<8x32xbf16>, vector<32x32xbf16>, vector<8x32xf32> -> vector<8x32xf32>
    %183 = vector.broadcast %181 : vector<1x32xf32> to vector<8x32xf32>
    %184 = arith.addf %182, %183 : vector<8x32xf32>
    %185 = arith.mulf %174, %174 : vector<8x32xf32>
    %cst_60 = arith.constant dense<0.000000e+00> : vector<8xf32>
    %186 = vector.multi_reduction <add>, %185, %cst_60 [1] : vector<8x32xf32> to vector<8xf32>
    %187 = vector.shape_cast %186 : vector<8xf32> to vector<8x1xf32>
    %cst_61 = arith.constant 3.200000e+01 : f32
    %188 = vector.broadcast %cst_61 : f32 to vector<8x1xf32>
    %189 = arith.divf %187, %188 : vector<8x1xf32>
    %cst_62 = arith.constant 9.99999997E-7 : f32
    %190 = vector.broadcast %cst_62 : f32 to vector<8x1xf32>
    %191 = arith.addf %189, %190 : vector<8x1xf32>
    %192 = math.rsqrt %191 : vector<8x1xf32>
    %193 = arith.mulf %179, %179 : vector<8x32xf32>
    %cst_63 = arith.constant dense<0.000000e+00> : vector<8xf32>
    %194 = vector.multi_reduction <add>, %193, %cst_63 [1] : vector<8x32xf32> to vector<8xf32>
    %195 = vector.shape_cast %194 : vector<8xf32> to vector<8x1xf32>
    %cst_64 = arith.constant 3.200000e+01 : f32
    %196 = vector.broadcast %cst_64 : f32 to vector<8x1xf32>
    %197 = arith.divf %195, %196 : vector<8x1xf32>
    %cst_65 = arith.constant 9.99999997E-7 : f32
    %198 = vector.broadcast %cst_65 : f32 to vector<8x1xf32>
    %199 = arith.addf %197, %198 : vector<8x1xf32>
    %200 = math.rsqrt %199 : vector<8x1xf32>
    %201 = vector.broadcast %192 : vector<8x1xf32> to vector<8x32xf32>
    %202 = arith.mulf %174, %201 : vector<8x32xf32>
    %c35 = arith.constant 35 : index
    %c0_66 = arith.constant 0 : index
    %203 = vector.load %arg4[%c35, %c0_66] : memref<41x32xf32, #tpu.memory_space<vmem>>, vector<1x32xf32>
    %204 = vector.broadcast %203 : vector<1x32xf32> to vector<8x32xf32>
    %205 = arith.mulf %202, %204 : vector<8x32xf32>
    %206 = vector.broadcast %200 : vector<8x1xf32> to vector<8x32xf32>
    %207 = arith.mulf %179, %206 : vector<8x32xf32>
    %c37 = arith.constant 37 : index
    %c0_67 = arith.constant 0 : index
    %208 = vector.load %arg4[%c37, %c0_67] : memref<41x32xf32, #tpu.memory_space<vmem>>, vector<1x32xf32>
    %209 = vector.broadcast %208 : vector<1x32xf32> to vector<8x32xf32>
    %210 = arith.mulf %207, %209 : vector<8x32xf32>
    %211 = vector.extract_strided_slice %205 {offsets = [0, 0], sizes = [8, 8], strides = [1, 1]} : vector<8x32xf32> to vector<8x8xf32>
    %212 = vector.shape_cast %211 : vector<8x8xf32> to vector<1x8x8xf32>
    %213 = vector.extract_strided_slice %205 {offsets = [0, 8], sizes = [8, 8], strides = [1, 1]} : vector<8x32xf32> to vector<8x8xf32>
    %214 = vector.shape_cast %213 : vector<8x8xf32> to vector<1x8x8xf32>
    %215 = vector.extract_strided_slice %205 {offsets = [0, 16], sizes = [8, 8], strides = [1, 1]} : vector<8x32xf32> to vector<8x8xf32>
    %216 = vector.shape_cast %215 : vector<8x8xf32> to vector<1x8x8xf32>
    %217 = vector.extract_strided_slice %205 {offsets = [0, 24], sizes = [8, 8], strides = [1, 1]} : vector<8x32xf32> to vector<8x8xf32>
    %218 = vector.shape_cast %217 : vector<8x8xf32> to vector<1x8x8xf32>
    %219 = tpu.concatenate %212, %214, %216, %218 in 0 : vector<1x8x8xf32>, vector<1x8x8xf32>, vector<1x8x8xf32>, vector<1x8x8xf32> -> vector<4x8x8xf32>
    %220 = arith.truncf %219 : vector<4x8x8xf32> to vector<4x8x8xbf16>
    %221 = vector.extract_strided_slice %210 {offsets = [0, 0], sizes = [8, 8], strides = [1, 1]} : vector<8x32xf32> to vector<8x8xf32>
    %222 = vector.shape_cast %221 : vector<8x8xf32> to vector<1x8x8xf32>
    %223 = vector.extract_strided_slice %210 {offsets = [0, 8], sizes = [8, 8], strides = [1, 1]} : vector<8x32xf32> to vector<8x8xf32>
    %224 = vector.shape_cast %223 : vector<8x8xf32> to vector<1x8x8xf32>
    %225 = vector.extract_strided_slice %210 {offsets = [0, 16], sizes = [8, 8], strides = [1, 1]} : vector<8x32xf32> to vector<8x8xf32>
    %226 = vector.shape_cast %225 : vector<8x8xf32> to vector<1x8x8xf32>
    %227 = vector.extract_strided_slice %210 {offsets = [0, 24], sizes = [8, 8], strides = [1, 1]} : vector<8x32xf32> to vector<8x8xf32>
    %228 = vector.shape_cast %227 : vector<8x8xf32> to vector<1x8x8xf32>
    %229 = tpu.concatenate %222, %224, %226, %228 in 0 : vector<1x8x8xf32>, vector<1x8x8xf32>, vector<1x8x8xf32>, vector<1x8x8xf32> -> vector<4x8x8xf32>
    %230 = arith.truncf %229 : vector<4x8x8xf32> to vector<4x8x8xbf16>
    %231 = vector.extract_strided_slice %184 {offsets = [0, 0], sizes = [8, 8], strides = [1, 1]} : vector<8x32xf32> to vector<8x8xf32>
    %232 = vector.shape_cast %231 : vector<8x8xf32> to vector<1x8x8xf32>
    %233 = vector.extract_strided_slice %184 {offsets = [0, 8], sizes = [8, 8], strides = [1, 1]} : vector<8x32xf32> to vector<8x8xf32>
    %234 = vector.shape_cast %233 : vector<8x8xf32> to vector<1x8x8xf32>
    %235 = vector.extract_strided_slice %184 {offsets = [0, 16], sizes = [8, 8], strides = [1, 1]} : vector<8x32xf32> to vector<8x8xf32>
    %236 = vector.shape_cast %235 : vector<8x8xf32> to vector<1x8x8xf32>
    %237 = vector.extract_strided_slice %184 {offsets = [0, 24], sizes = [8, 8], strides = [1, 1]} : vector<8x32xf32> to vector<8x8xf32>
    %238 = vector.shape_cast %237 : vector<8x8xf32> to vector<1x8x8xf32>
    %239 = tpu.concatenate %232, %234, %236, %238 in 0 : vector<1x8x8xf32>, vector<1x8x8xf32>, vector<1x8x8xf32>, vector<1x8x8xf32> -> vector<4x8x8xf32>
    %240 = arith.truncf %239 : vector<4x8x8xf32> to vector<4x8x8xbf16>
    "tpu.trace_start"() <{level = 10 : i32, message = "hld,hmd->hlm"}> : () -> ()
    %cst_68 = arith.constant dense<0.000000e+00> : vector<4x8x8xf32>
    %241 = tpu.matmul %220, %230, %cst_68 {dimension_numbers = #tpu.dot_dimension_numbers<[2], [2], [1], [1], [0, 0, 0, 1, 1, 1], [0], [0]>} : vector<4x8x8xbf16>, vector<4x8x8xbf16>, vector<4x8x8xf32> -> vector<4x8x8xf32>
    "tpu.trace_stop"() : () -> ()
    %cst_69 = arith.constant dense<0xFF800000> : vector<4x8xf32>
    %242 = vector.multi_reduction <maximumf>, %241, %cst_69 [2] : vector<4x8x8xf32> to vector<4x8xf32>
    %243 = vector.shape_cast %242 : vector<4x8xf32> to vector<4x8x1xf32>
    %244 = vector.broadcast %243 : vector<4x8x1xf32> to vector<4x8x8xf32>
    %245 = arith.subf %241, %244 : vector<4x8x8xf32>
    %246 = math.exp %245 : vector<4x8x8xf32>
    %cst_70 = arith.constant dense<0.000000e+00> : vector<4x8xf32>
    %247 = vector.multi_reduction <add>, %246, %cst_70 [2] : vector<4x8x8xf32> to vector<4x8xf32>
    %248 = vector.shape_cast %247 : vector<4x8xf32> to vector<4x8x1xf32>
    %249 = vector.broadcast %248 : vector<4x8x1xf32> to vector<4x8x8xf32>
    %250 = arith.divf %246, %249 : vector<4x8x8xf32>
    %251 = arith.truncf %250 : vector<4x8x8xf32> to vector<4x8x8xbf16>
    "tpu.trace_start"() <{level = 10 : i32, message = "hlm,hmd->hld"}> : () -> ()
    %cst_71 = arith.constant dense<0.000000e+00> : vector<4x8x8xf32>
    %252 = tpu.matmul %251, %240, %cst_71 {dimension_numbers = #tpu.dot_dimension_numbers<[2], [1], [1], [2], [0, 0, 0, 1, 1, 2], [0], [0]>} : vector<4x8x8xbf16>, vector<4x8x8xbf16>, vector<4x8x8xf32> -> vector<4x8x8xf32>
    "tpu.trace_stop"() : () -> ()
    %253 = vector.extract_strided_slice %252 {offsets = [0, 0, 0], sizes = [1, 8, 8], strides = [1, 1, 1]} : vector<4x8x8xf32> to vector<1x8x8xf32>
    %254 = vector.shape_cast %253 : vector<1x8x8xf32> to vector<8x8xf32>
    %255 = vector.extract_strided_slice %252 {offsets = [1, 0, 0], sizes = [1, 8, 8], strides = [1, 1, 1]} : vector<4x8x8xf32> to vector<1x8x8xf32>
    %256 = vector.shape_cast %255 : vector<1x8x8xf32> to vector<8x8xf32>
    %257 = vector.extract_strided_slice %252 {offsets = [2, 0, 0], sizes = [1, 8, 8], strides = [1, 1, 1]} : vector<4x8x8xf32> to vector<1x8x8xf32>
    %258 = vector.shape_cast %257 : vector<1x8x8xf32> to vector<8x8xf32>
    %259 = vector.extract_strided_slice %252 {offsets = [3, 0, 0], sizes = [1, 8, 8], strides = [1, 1, 1]} : vector<4x8x8xf32> to vector<1x8x8xf32>
    %260 = vector.shape_cast %259 : vector<1x8x8xf32> to vector<8x8xf32>
    %261 = tpu.concatenate %254, %256, %258, %260 in 1 : vector<8x8xf32>, vector<8x8xf32>, vector<8x8xf32>, vector<8x8xf32> -> vector<8x32xf32>
    %262 = arith.truncf %261 : vector<8x32xf32> to vector<8x32xbf16>
    %c288 = arith.constant 288 : index
    %c0_72 = arith.constant 0 : index
    %263 = vector.load %arg5[%c288, %c0_72] : memref<384x32xbf16, #tpu.memory_space<vmem>>, vector<32x32xbf16>
    %cst_73 = arith.constant dense<0.000000e+00> : vector<8x32xf32>
    %264 = tpu.matmul %262, %263, %cst_73 {dimension_numbers = #tpu.dot_dimension_numbers<[1], [0], [0], [1], [0, 0, 1, 1], [], []>} : vector<8x32xbf16>, vector<32x32xbf16>, vector<8x32xf32> -> vector<8x32xf32>
    %c39 = arith.constant 39 : index
    %c0_74 = arith.constant 0 : index
    %265 = vector.load %arg4[%c39, %c0_74] : memref<41x32xf32, #tpu.memory_space<vmem>>, vector<1x32xf32>
    %266 = vector.broadcast %265 : vector<1x32xf32> to vector<8x32xf32>
    %267 = arith.addf %264, %266 : vector<8x32xf32>
    %268 = arith.addf %167, %267 : vector<8x32xf32>
    %cst_75 = arith.constant dense<0.000000e+00> : vector<8xf32>
    %269 = vector.multi_reduction <add>, %268, %cst_75 [1] : vector<8x32xf32> to vector<8xf32>
    %270 = vector.shape_cast %269 : vector<8xf32> to vector<8x1xf32>
    %cst_76 = arith.constant 3.200000e+01 : f32
    %271 = vector.broadcast %cst_76 : f32 to vector<8x1xf32>
    %272 = arith.divf %270, %271 : vector<8x1xf32>
    %273 = vector.broadcast %272 : vector<8x1xf32> to vector<8x32xf32>
    %274 = arith.subf %268, %273 : vector<8x32xf32>
    %275 = arith.mulf %274, %274 : vector<8x32xf32>
    %cst_77 = arith.constant dense<0.000000e+00> : vector<8xf32>
    %276 = vector.multi_reduction <add>, %275, %cst_77 [1] : vector<8x32xf32> to vector<8xf32>
    %277 = vector.shape_cast %276 : vector<8xf32> to vector<8x1xf32>
    %cst_78 = arith.constant 3.200000e+01 : f32
    %278 = vector.broadcast %cst_78 : f32 to vector<8x1xf32>
    %279 = arith.divf %277, %278 : vector<8x1xf32>
    %280 = vector.broadcast %272 : vector<8x1xf32> to vector<8x32xf32>
    %281 = arith.subf %268, %280 : vector<8x32xf32>
    %cst_79 = arith.constant 9.99999997E-7 : f32
    %282 = vector.broadcast %cst_79 : f32 to vector<8x1xf32>
    %283 = arith.addf %279, %282 : vector<8x1xf32>
    %284 = math.rsqrt %283 : vector<8x1xf32>
    %285 = vector.broadcast %284 : vector<8x1xf32> to vector<8x32xf32>
    %286 = arith.mulf %281, %285 : vector<8x32xf32>
    %cst_80 = arith.constant 1.000000e+00 : f32
    %287 = vector.broadcast %cst_80 : f32 to vector<1x32xf32>
    %288 = arith.addf %287, %12 : vector<1x32xf32>
    %289 = vector.broadcast %288 : vector<1x32xf32> to vector<8x32xf32>
    %290 = arith.mulf %286, %289 : vector<8x32xf32>
    %291 = vector.broadcast %11 : vector<1x32xf32> to vector<8x32xf32>
    %292 = arith.addf %290, %291 : vector<8x32xf32>
    %293 = arith.truncf %292 : vector<8x32xf32> to vector<8x32xbf16>
    %c0_81 = arith.constant 0 : index
    %c0_82 = arith.constant 0 : index
    %294 = vector.load %arg6[%c0_81, %c0_82] : memref<32x64xbf16, #tpu.memory_space<vmem>>, vector<32x64xbf16>
    %cst_83 = arith.constant dense<0.000000e+00> : vector<8x64xf32>
    %295 = tpu.matmul %293, %294, %cst_83 {dimension_numbers = #tpu.dot_dimension_numbers<[1], [0], [0], [1], [0, 0, 1, 1], [], []>} : vector<8x32xbf16>, vector<32x64xbf16>, vector<8x64xf32> -> vector<8x64xf32>
    %c0_84 = arith.constant 0 : index
    %c0_85 = arith.constant 0 : index
    %296 = vector.load %arg7[%c0_84, %c0_85] : memref<1x64xf32, #tpu.memory_space<vmem>>, vector<1x64xf32>
    %297 = vector.broadcast %296 : vector<1x64xf32> to vector<8x64xf32>
    %298 = arith.addf %295, %297 : vector<8x64xf32>
    %cst_86 = arith.constant 5.000000e-01 : f32
    %299 = vector.broadcast %cst_86 : f32 to vector<8x64xf32>
    %300 = arith.mulf %299, %298 : vector<8x64xf32>
    %cst_87 = arith.constant 4.471500e-02 : f32
    %301 = vector.broadcast %cst_87 : f32 to vector<8x64xf32>
    %302 = arith.mulf %301, %298 : vector<8x64xf32>
    %303 = arith.mulf %302, %298 : vector<8x64xf32>
    %304 = arith.mulf %303, %298 : vector<8x64xf32>
    %305 = arith.addf %298, %304 : vector<8x64xf32>
    %cst_88 = arith.constant 0.797884583 : f32
    %306 = vector.broadcast %cst_88 : f32 to vector<8x64xf32>
    %307 = arith.mulf %306, %305 : vector<8x64xf32>
    %308 = math.tanh %307 : vector<8x64xf32>
    %cst_89 = arith.constant 1.000000e+00 : f32
    %309 = vector.broadcast %cst_89 : f32 to vector<8x64xf32>
    %310 = arith.addf %309, %308 : vector<8x64xf32>
    %311 = arith.mulf %300, %310 : vector<8x64xf32>
    %312 = arith.truncf %311 : vector<8x64xf32> to vector<8x64xbf16>
    %c320 = arith.constant 320 : index
    %c0_90 = arith.constant 0 : index
    %313 = vector.load %arg5[%c320, %c0_90] : memref<384x32xbf16, #tpu.memory_space<vmem>>, vector<64x32xbf16>
    %cst_91 = arith.constant dense<0.000000e+00> : vector<8x32xf32>
    %314 = tpu.matmul %312, %313, %cst_91 {dimension_numbers = #tpu.dot_dimension_numbers<[1], [0], [0], [1], [0, 0, 1, 1], [], []>} : vector<8x64xbf16>, vector<64x32xbf16>, vector<8x32xf32> -> vector<8x32xf32>
    %c40 = arith.constant 40 : index
    %c0_92 = arith.constant 0 : index
    %315 = vector.load %arg4[%c40, %c0_92] : memref<41x32xf32, #tpu.memory_space<vmem>>, vector<1x32xf32>
    %316 = vector.broadcast %315 : vector<1x32xf32> to vector<8x32xf32>
    %317 = arith.addf %314, %316 : vector<8x32xf32>
    %318 = vector.broadcast %13 : vector<1x32xf32> to vector<8x32xf32>
    %319 = arith.mulf %317, %318 : vector<8x32xf32>
    %320 = arith.addf %268, %319 : vector<8x32xf32>
    %321 = vector.extract_strided_slice %320 {offsets = [0, 0], sizes = [1, 32], strides = [1, 1]} : vector<8x32xf32> to vector<1x32xf32>
    %322 = vector.extract_strided_slice %320 {offsets = [1, 0], sizes = [1, 32], strides = [1, 1]} : vector<8x32xf32> to vector<1x32xf32>
    %323 = vector.extract_strided_slice %320 {offsets = [2, 0], sizes = [1, 32], strides = [1, 1]} : vector<8x32xf32> to vector<1x32xf32>
    %324 = vector.extract_strided_slice %320 {offsets = [3, 0], sizes = [1, 32], strides = [1, 1]} : vector<8x32xf32> to vector<1x32xf32>
    %325 = vector.extract_strided_slice %320 {offsets = [4, 0], sizes = [1, 32], strides = [1, 1]} : vector<8x32xf32> to vector<1x32xf32>
    %326 = vector.extract_strided_slice %320 {offsets = [5, 0], sizes = [1, 32], strides = [1, 1]} : vector<8x32xf32> to vector<1x32xf32>
    %327 = vector.extract_strided_slice %320 {offsets = [6, 0], sizes = [1, 32], strides = [1, 1]} : vector<8x32xf32> to vector<1x32xf32>
    %328 = vector.extract_strided_slice %320 {offsets = [7, 0], sizes = [1, 32], strides = [1, 1]} : vector<8x32xf32> to vector<1x32xf32>
    %329 = tpu.concatenate %321, %322, %323, %324, %325, %326, %327, %328 in 1 : vector<1x32xf32>, vector<1x32xf32>, vector<1x32xf32>, vector<1x32xf32>, vector<1x32xf32>, vector<1x32xf32>, vector<1x32xf32>, vector<1x32xf32> -> vector<1x256xf32>
    %330 = vector.shape_cast %329 : vector<1x256xf32> to vector<1x1x256xf32>
    %c0_93 = arith.constant 0 : index
    %c0_94 = arith.constant 0 : index
    %c0_95 = arith.constant 0 : index
    %331 = vector.load %arg8[%c0_93, %c0_94, %c0_95] : memref<1x1x256xf32, #tpu.memory_space<vmem>>, vector<1x1x256xf32>
    tpu.vector_store %arg8[%c0_93, %c0_94, %c0_95], %330 {strides = array<i32>} : memref<1x1x256xf32, #tpu.memory_space<vmem>>, vector<1x1x256xf32>,
    return
  }
  func.func @transform_0(%arg0: i32) -> (i32, i32, i32) {
    %c0_i32 = arith.constant 0 : i32
    %c0_i32_0 = arith.constant 0 : i32
    %c0_i32_1 = arith.constant 0 : i32
    return %arg0, %c0_i32, %c0_i32_0 : i32, i32, i32
  }
  func.func @transform_1(%arg0: i32) -> (i32, i32, i32) {
    %c0_i32 = arith.constant 0 : i32
    %c0_i32_0 = arith.constant 0 : i32
    %c0_i32_1 = arith.constant 0 : i32
    return %arg0, %c0_i32, %c0_i32_0 : i32, i32, i32
  }
  func.func @transform_2(%arg0: i32) -> (i32, i32, i32) {
    %c0_i32 = arith.constant 0 : i32
    %c0_i32_0 = arith.constant 0 : i32
    %c0_i32_1 = arith.constant 0 : i32
    return %arg0, %c0_i32, %c0_i32_0 : i32, i32, i32
  }
  func.func @transform_3(%arg0: i32) -> (i32, i32) {
    %c0_i32 = arith.constant 0 : i32
    %c0_i32_0 = arith.constant 0 : i32
    %c0_i32_1 = arith.constant 0 : i32
    return %c0_i32, %c0_i32_0 : i32, i32
  }
  func.func @transform_4(%arg0: i32) -> (i32, i32) {
    %c0_i32 = arith.constant 0 : i32
    %c0_i32_0 = arith.constant 0 : i32
    %c0_i32_1 = arith.constant 0 : i32
    return %c0_i32, %c0_i32_0 : i32, i32
  }
  func.func @transform_5(%arg0: i32) -> (i32, i32) {
    %c0_i32 = arith.constant 0 : i32
    %c0_i32_0 = arith.constant 0 : i32
    %c0_i32_1 = arith.constant 0 : i32
    return %c0_i32, %c0_i32_0 : i32, i32
  }
  func.func @transform_6(%arg0: i32) -> (i32, i32) {
    %c0_i32 = arith.constant 0 : i32
    %c0_i32_0 = arith.constant 0 : i32
    %c0_i32_1 = arith.constant 0 : i32
    return %c0_i32, %c0_i32_0 : i32, i32
  }
  func.func @transform_7(%arg0: i32) -> (i32, i32, i32) {
    %c0_i32 = arith.constant 0 : i32
    %c0_i32_0 = arith.constant 0 : i32
    %c0_i32_1 = arith.constant 0 : i32
    return %arg0, %c0_i32, %c0_i32_0 : i32, i32, i32
  }
}

</mosaic_0001>

<llo_original>
// kernel: wan_attention_block_pallas.1
$region0: #{wan_attention_block_pallas.1}
  #allocation0 [shape = 'u32[]', space=smem, size = 0x4, offset = 0x4, fixed_abs, tag = 'smem constant byte address 0x4 - core index']
  #allocation1 [shape = 'u32[72,128]{1,0:T(1,128)}', space=vmem, size = 0x9000, scoped, tag = 'internal scratch']
  %s0 = inlined_call_operand.vmem [shape: f32[2,8,32], index: 0, kind: input, shape index: {}]
  %s1 = inlined_call_operand.vmem [shape: f32[2,6,32], index: 1, kind: input, shape index: {}]
  %s2 = inlined_call_operand.vmem [shape: f32[2,8,32], index: 2, kind: input, shape index: {}]
  %s3 = inlined_call_operand.vmem [shape: f32[41,32], index: 3, kind: input, shape index: {}]
  %s4 = inlined_call_operand.vmem [shape: bf16[384,32], index: 4, kind: input, shape index: {}]
  %s5 = inlined_call_operand.vmem [shape: bf16[32,64], index: 5, kind: input, shape index: {}]
  %s6 = inlined_call_operand.vmem [shape: f32[1,64], index: 6, kind: input, shape index: {}]
  %s7 = inlined_call_operand.vmem [shape: f32[2,1,256], index: 7, kind: output, shape index: {}]
  %s8 = sld [smem:[#allocation0]]
  $region61: #{wan_attention_block_pallas.1} parent=0
    _
  %s10 = ssub.s32 1, %s8
  %s11 = scalar_select 0, %s10, %s8
  loop: start=0, step=1, limit=4
  $region2: #{wan_attention_block_pallas.1} parent=0 // loop_pre_header
    _
  $region3: #{wan_attention_block_pallas.1} parent=0 // loop_header
    %s13 = sphi 0, %s17
    %p14 = scmp.ge.s32.totalorder %s13, 4
    %s23 = sphi 0, %s25
    %s26 = sphi 0, %s23
    %s27 = sphi 0, %s26
    %s43 = sphi 0, %s27
    %s49 = sphi 0, %s51
    %s52 = sphi 0, %s49
    %s53 = sphi 0, %s52
    %s69 = sphi 0, %s53
    %s75 = sphi 0, %s77
    %s78 = sphi 0, %s75
    %s79 = sphi 0, %s78
    %s95 = sphi 0, %s79
    %s99 = sphi 0, %s99
    %s101 = sphi 0, %s99
    %s102 = sphi 0, %s101
    %s116 = sphi 0, %s102
    %s120 = sphi 0, %s120
    %s122 = sphi 0, %s120
    %s123 = sphi 0, %s122
    %s137 = sphi 0, %s123
    %s141 = sphi 0, %s141
    %s143 = sphi 0, %s141
    %s144 = sphi 0, %s143
    %s158 = sphi 0, %s144
    %s162 = sphi 0, %s162
    %s164 = sphi 0, %s162
    %s165 = sphi 0, %s164
    %s179 = sphi 0, %s165
    %s185 = sphi 0, %s187
    %s188 = sphi 0, %s185
    %s189 = sphi 0, %s188
    %s205 = sphi 0, %s189
  $region4: #{wan_attention_block_pallas.1} parent=0 // loop_header_branch
    %16 = sbr.rel (%p14) target = $region8
  $region5: #{wan_attention_block_pallas.1} parent=0 // loop_body
    %s18 = ssub.s32 %s13, 1
    %s19 = ssub.s32 %s13, 2
    %s20 = sadd.s32 %s13, 1
    %s21 = ssub.s32 %s13, %s20
    %p22 = scmp.eq.s32.totalorder %s21, 0
    %s24 = sadd.s32 %s23, 1
    %s25 = scalar_select %p22, %s23, %s24
    %p28 = pneg %p22
    %p29 = scmp.eq.s32.totalorder %s13, 1
    %p30 = por %p28, %p29
    %p31 = scmp.ne.s32.totalorder %s23, %s26
    %p32 = scmp.eq.s32.totalorder %s13, 0
    %p33 = por %p31, %p32
    %p34 = scmp.ne.s32.totalorder %s23, %s26
    %p35 = scmp.eq.s32.totalorder %s18, 1
    %p36 = por %p34, %p35
    %p37 = scmp.ne.s32.totalorder %s26, %s27
    %p38 = scmp.eq.s32.totalorder %s18, 0
    %p39 = por %p37, %p38
    %p40 = scmp.ne.s32.totalorder %s26, %s27
    %p41 = scmp.eq.s32.totalorder %s19, 1
    %p42 = por %p40, %p41
    %p44 = scmp.ne.s32.totalorder %s27, %s43
    %p45 = scmp.eq.s32.totalorder %s19, 0
    %p46 = por %p44, %p45
    %s47 = ssub.s32 %s13, %s20
    %p48 = scmp.eq.s32.totalorder %s47, 0
    %s50 = sadd.s32 %s49, 1
    %s51 = scalar_select %p48, %s49, %s50
    %p54 = pneg %p48
    %p55 = scmp.eq.s32.totalorder %s13, 1
    %p56 = por %p54, %p55
    %p57 = scmp.ne.s32.totalorder %s49, %s52
    %p58 = scmp.eq.s32.totalorder %s13, 0
    %p59 = por %p57, %p58
    %p60 = scmp.ne.s32.totalorder %s49, %s52
    %p61 = scmp.eq.s32.totalorder %s18, 1
    %p62 = por %p60, %p61
    %p63 = scmp.ne.s32.totalorder %s52, %s53
    %p64 = scmp.eq.s32.totalorder %s18, 0
    %p65 = por %p63, %p64
    %p66 = scmp.ne.s32.totalorder %s52, %s53
    %p67 = scmp.eq.s32.totalorder %s19, 1
    %p68 = por %p66, %p67
    %p70 = scmp.ne.s32.totalorder %s53, %s69
    %p71 = scmp.eq.s32.totalorder %s19, 0
    %p72 = por %p70, %p71
    %s73 = ssub.s32 %s13, %s20
    %p74 = scmp.eq.s32.totalorder %s73, 0
    %s76 = sadd.s32 %s75, 1
    %s77 = scalar_select %p74, %s75, %s76
    %p80 = pneg %p74
    %p81 = scmp.eq.s32.totalorder %s13, 1
    %p82 = por %p80, %p81
    %p83 = scmp.ne.s32.totalorder %s75, %s78
    %p84 = scmp.eq.s32.totalorder %s13, 0
    %p85 = por %p83, %p84
    %p86 = scmp.ne.s32.totalorder %s75, %s78
    %p87 = scmp.eq.s32.totalorder %s18, 1
    %p88 = por %p86, %p87
    %p89 = scmp.ne.s32.totalorder %s78, %s79
    %p90 = scmp.eq.s32.totalorder %s18, 0
    %p91 = por %p89, %p90
    %p92 = scmp.ne.s32.totalorder %s78, %s79
    %p93 = scmp.eq.s32.totalorder %s19, 1
    %p94 = por %p92, %p93
    %p96 = scmp.ne.s32.totalorder %s79, %s95
    %p97 = scmp.eq.s32.totalorder %s19, 0
    %p98 = por %p96, %p97
    %s100 = sadd.s32 %s99, 1
    %p103 = scmp.eq.s32.totalorder %s13, 1
    %p104 = scmp.ne.s32.totalorder %s99, %s101
    %p105 = scmp.eq.s32.totalorder %s13, 0
    %p106 = por %p104, %p105
    %p107 = scmp.ne.s32.totalorder %s99, %s101
    %p108 = scmp.eq.s32.totalorder %s18, 1
    %p109 = por %p107, %p108
    %p110 = scmp.ne.s32.totalorder %s101, %s102
    %p111 = scmp.eq.s32.totalorder %s18, 0
    %p112 = por %p110, %p111
    %p113 = scmp.ne.s32.totalorder %s101, %s102
    %p114 = scmp.eq.s32.totalorder %s19, 1
    %p115 = por %p113, %p114
    %p117 = scmp.ne.s32.totalorder %s102, %s116
    %p118 = scmp.eq.s32.totalorder %s19, 0
    %p119 = por %p117, %p118
    %s121 = sadd.s32 %s120, 1
    %p124 = scmp.eq.s32.totalorder %s13, 1
    %p125 = scmp.ne.s32.totalorder %s120, %s122
    %p126 = scmp.eq.s32.totalorder %s13, 0
    %p127 = por %p125, %p126
    %p128 = scmp.ne.s32.totalorder %s120, %s122
    %p129 = scmp.eq.s32.totalorder %s18, 1
    %p130 = por %p128, %p129
    %p131 = scmp.ne.s32.totalorder %s122, %s123
    %p132 = scmp.eq.s32.totalorder %s18, 0
    %p133 = por %p131, %p132
    %p134 = scmp.ne.s32.totalorder %s122, %s123
    %p135 = scmp.eq.s32.totalorder %s19, 1
    %p136 = por %p134, %p135
    %p138 = scmp.ne.s32.totalorder %s123, %s137
    %p139 = scmp.eq.s32.totalorder %s19, 0
    %p140 = por %p138, %p139
    %s142 = sadd.s32 %s141, 1
    %p145 = scmp.eq.s32.totalorder %s13, 1
    %p146 = scmp.ne.s32.totalorder %s141, %s143
    %p147 = scmp.eq.s32.totalorder %s13, 0
    %p148 = por %p146, %p147
    %p149 = scmp.ne.s32.totalorder %s141, %s143
    %p150 = scmp.eq.s32.totalorder %s18, 1
    %p151 = por %p149, %p150
    %p152 = scmp.ne.s32.totalorder %s143, %s144
    %p153 = scmp.eq.s32.totalorder %s18, 0
    %p154 = por %p152, %p153
    %p155 = scmp.ne.s32.totalorder %s143, %s144
    %p156 = scmp.eq.s32.totalorder %s19, 1
    %p157 = por %p155, %p156
    %p159 = scmp.ne.s32.totalorder %s144, %s158
    %p160 = scmp.eq.s32.totalorder %s19, 0
    %p161 = por %p159, %p160
    %s163 = sadd.s32 %s162, 1
    %p166 = scmp.eq.s32.totalorder %s13, 1
    %p167 = scmp.ne.s32.totalorder %s162, %s164
    %p168 = scmp.eq.s32.totalorder %s13, 0
    %p169 = por %p167, %p168
    %p170 = scmp.ne.s32.totalorder %s162, %s164
    %p171 = scmp.eq.s32.totalorder %s18, 1
    %p172 = por %p170, %p171
    %p173 = scmp.ne.s32.totalorder %s164, %s165
    %p174 = scmp.eq.s32.totalorder %s18, 0
    %p175 = por %p173, %p174
    %p176 = scmp.ne.s32.totalorder %s164, %s165
    %p177 = scmp.eq.s32.totalorder %s19, 1
    %p178 = por %p176, %p177
    %p180 = scmp.ne.s32.totalorder %s165, %s179
    %p181 = scmp.eq.s32.totalorder %s19, 0
    %p182 = por %p180, %p181
    %s183 = ssub.s32 %s13, %s20
    %p184 = scmp.eq.s32.totalorder %s183, 0
    %s186 = sadd.s32 %s185, 1
    %s187 = scalar_select %p184, %s185, %s186
    %p190 = pneg %p184
    %p191 = scmp.eq.s32.totalorder %s13, 1
    %p192 = por %p190, %p191
    %p193 = scmp.ne.s32.totalorder %s185, %s188
    %p194 = scmp.eq.s32.totalorder %s13, 0
    %p195 = por %p193, %p194
    %p196 = scmp.ne.s32.totalorder %s185, %s188
    %p197 = scmp.eq.s32.totalorder %s18, 1
    %p198 = por %p196, %p197
    %p199 = scmp.ne.s32.totalorder %s188, %s189
    %p200 = scmp.eq.s32.totalorder %s18, 0
    %p201 = por %p199, %p200
    %p202 = scmp.ne.s32.totalorder %s188, %s189
    %p203 = scmp.eq.s32.totalorder %s19, 1
    %p204 = por %p202, %p203
    %p206 = scmp.ne.s32.totalorder %s189, %s205
    %p207 = scmp.eq.s32.totalorder %s19, 0
    %p208 = por %p206, %p207
    %p209 = scmp.le.s32.totalorder 1, %s13
    %p210 = scmp.lt.s32.totalorder %s13, 3
    %p211 = pnand %p209, %p210
    %p212 = pneg %p211
    // Predicated region
    $region9: #{wan_attention_block_pallas.1} parent=5 // pred_check
      _
    $region10: #{wan_attention_block_pallas.1} parent=5 // pred_check_branch
      %214 = sbr.rel (%p211) target = $region12
    $region11: #{wan_attention_block_pallas.1} parent=5 // pred_region
      %s215 = ssub.s32 %s13, 1
      // Predicated region
      $region13: #{wan_attention_block_pallas.1} parent=11 // pred_check
        %p216 = pneg %p112
      $region14: #{wan_attention_block_pallas.1} parent=11 // pred_check_branch
        %218 = sbr.rel (%p216) target = $region16
      $region15: #{wan_attention_block_pallas.1} parent=11 // pred_region
        _
      $region16: #{wan_attention_block_pallas.1} parent=11 // pred_fallthru
        _
      // Predicated region
      $region17: #{wan_attention_block_pallas.1} parent=11 // pred_check
        %p219 = pneg %p133
      $region18: #{wan_attention_block_pallas.1} parent=11 // pred_check_branch
        %221 = sbr.rel (%p219) target = $region20
      $region19: #{wan_attention_block_pallas.1} parent=11 // pred_region
        _
      $region20: #{wan_attention_block_pallas.1} parent=11 // pred_fallthru
        _
      // Predicated region
      $region21: #{wan_attention_block_pallas.1} parent=11 // pred_check
        %p222 = pneg %p154
      $region22: #{wan_attention_block_pallas.1} parent=11 // pred_check_branch
        %224 = sbr.rel (%p222) target = $region24
      $region23: #{wan_attention_block_pallas.1} parent=11 // pred_region
        _
      $region24: #{wan_attention_block_pallas.1} parent=11 // pred_fallthru
        _
      // Predicated region
      $region25: #{wan_attention_block_pallas.1} parent=11 // pred_check
        %p225 = pneg %p175
      $region26: #{wan_attention_block_pallas.1} parent=11 // pred_check_branch
        %227 = sbr.rel (%p225) target = $region28
      $region27: #{wan_attention_block_pallas.1} parent=11 // pred_region
        _
      $region28: #{wan_attention_block_pallas.1} parent=11 // pred_fallthru
        _
    $region12: #{wan_attention_block_pallas.1} parent=5 // pred_fallthru
      _
    %p228 = scmp.lt.s32.totalorder %s13, 2
    // Predicated region
    $region29: #{wan_attention_block_pallas.1} parent=5 // pred_check
      %p229 = pneg %p228
    $region30: #{wan_attention_block_pallas.1} parent=5 // pred_check_branch
      %231 = sbr.rel (%p229) target = $region32
    $region31: #{wan_attention_block_pallas.1} parent=5 // pred_region
      // Predicated region
      $region33: #{wan_attention_block_pallas.1} parent=31 // pred_check
        %p232 = pneg %p33
      $region34: #{wan_attention_block_pallas.1} parent=31 // pred_check_branch
        %234 = sbr.rel (%p232) target = $region36
      $region35: #{wan_attention_block_pallas.1} parent=31 // pred_region
        %p235 = scmp.lt.s32.totalorder %s13, 1
        %s236 = scalar_select %p235, %s13, 1
        %s237 = smul.addr %s236, 8
        %s238 = scalar_lea.vmem %s0, %s237
      $region36: #{wan_attention_block_pallas.1} parent=31 // pred_fallthru
        _
      // Predicated region
      $region37: #{wan_attention_block_pallas.1} parent=31 // pred_check
        %p239 = pneg %p59
      $region38: #{wan_attention_block_pallas.1} parent=31 // pred_check_branch
        %241 = sbr.rel (%p239) target = $region40
      $region39: #{wan_attention_block_pallas.1} parent=31 // pred_region
        %p242 = scmp.lt.s32.totalorder %s13, 1
        %s243 = scalar_select %p242, %s13, 1
        %s244 = smul.addr %s243, 8
        %s245 = scalar_lea.vmem %s1, %s244
      $region40: #{wan_attention_block_pallas.1} parent=31 // pred_fallthru
        _
      // Predicated region
      $region41: #{wan_attention_block_pallas.1} parent=31 // pred_check
        %p246 = pneg %p85
      $region42: #{wan_attention_block_pallas.1} parent=31 // pred_check_branch
        %248 = sbr.rel (%p246) target = $region44
      $region43: #{wan_attention_block_pallas.1} parent=31 // pred_region
        %p249 = scmp.lt.s32.totalorder %s13, 1
        %s250 = scalar_select %p249, %s13, 1
        %s251 = smul.addr %s250, 8
        %s252 = scalar_lea.vmem %s2, %s251
      $region44: #{wan_attention_block_pallas.1} parent=31 // pred_fallthru
        _
    $region32: #{wan_attention_block_pallas.1} parent=5 // pred_fallthru
      _
    %p253 = scmp.le.s32.totalorder 1, %s13
    %p254 = scmp.lt.s32.totalorder %s13, 3
    %p255 = pnand %p253, %p254
    %p256 = pneg %p255
    // Predicated region
    $region45: #{wan_attention_block_pallas.1} parent=5 // pred_check
      _
    $region46: #{wan_attention_block_pallas.1} parent=5 // pred_check_branch
      %258 = sbr.rel (%p255) target = $region48
    $region47: #{wan_attention_block_pallas.1} parent=5 // pred_region
      %s259 = ssub.s32 %s13, 1
      %p260 = scmp.lt.s32.totalorder %s18, 1
      %s261 = scalar_select %p260, %s18, 1
      %s262 = smul.addr %s261, 8
      %s263 = scalar_lea.vmem %s0, %s262
      %p264 = pneg %p39
      %p265 = pneg %p36
      %p266 = scmp.lt.s32.totalorder %s18, 1
      %s267 = scalar_select %p266, %s18, 1
      %s268 = smul.addr %s267, 8
      %s269 = scalar_lea.vmem %s1, %s268
      %p270 = pneg %p65
      %p271 = pneg %p62
      %p272 = scmp.lt.s32.totalorder %s18, 1
      %s273 = scalar_select %p272, %s18, 1
      %s274 = smul.addr %s273, 8
      %s275 = scalar_lea.vmem %s2, %s274
      %p276 = pneg %p91
      %p277 = pneg %p88
      %p278 = pneg %p112
      %p279 = pneg %p109
      %p280 = pneg %p133
      %p281 = pneg %p130
      %p282 = pneg %p154
      %p283 = pneg %p151
      %p284 = pneg %p175
      %p285 = pneg %p172
      %p286 = pneg %p201
      %p287 = pneg %p198
      %p288 = scmp.lt.s32.totalorder %s18, 1
      %s289 = scalar_select %p288, %s18, 1
      %s290 = smul.addr %s289, 2
      %s291 = scalar_lea.vmem %s7, %s290
      %p292 = scmp.lt.s32.totalorder %s18, 1
      %s293 = scalar_select %p292, %s18, 1
      %s294 = smul.addr %s293, 8
      %s295 = scalar_lea.vmem %s0, %s294
      %p296 = scmp.lt.s32.totalorder %s18, 1
      %s297 = scalar_select %p296, %s18, 1
      %s298 = smul.addr %s297, 8
      %s299 = scalar_lea.vmem %s1, %s298
      %p300 = scmp.lt.s32.totalorder %s18, 1
      %s301 = scalar_select %p300, %s18, 1
      %s302 = smul.addr %s301, 8
      %s303 = scalar_lea.vmem %s2, %s302
      %p304 = scmp.lt.s32.totalorder %s18, 1
      %s305 = scalar_select %p304, %s18, 1
      %s306 = smul.addr %s305, 2
      %s307 = scalar_lea.vmem %s7, %s306
      %v309 = vld [vmem:[%s295] sm:$0xff]
      %v310 = vld [vmem:[%s303] sm:$0xff]
      %v311 = vld [vmem:[%s3] sm:$0x3f]
      %v312 = vld [vmem:[%s299] sm:$0x3f]
      %v313 = vadd.f32 %v312, %v311
      %vm314 = vcmask 261120
      %v315 = vsel %vm314, %v309, 0.0
      %316 = vadd.xlane.f32.xlu0 %v315
      %v317 = vpop.xlane.xlu0 %316
      %v318 = vrcp.pop 32.0
      %v319 = vmul.f32 32.0, %v318
      %v320 = vsub.f32 1.0, %v319
      %v321 = vmul.f32 %v318, %v320
      %v322 = vadd.f32 %v318, %v321
      %vm323 = vweird.f32 %v318
      %v324 = vsel %vm323, %v318, %v322
      %v325 = vmul.f32 %v317, %v324
      %v326 = vsub.f32 %v309, %v325
      %v327 = vmul.f32 %v326, %v326
      %v328 = vsel %vm314, %v327, 0.0
      %329 = vadd.xlane.f32.xlu0 %v328
      %v330 = vpop.xlane.xlu0 %329
      %v331 = vmul.f32 %v330, %v324
      %v332 = vadd.f32 %v331, 1e-06
      %v333 = vrsqrt.pop %v332
      %v334 = vmul.f32 %v333, %v332
      %v335 = vmul.f32 %v334, %v333
      %v336 = vmul.f32 0.5, %v335
      %v337 = vsub.f32 1.5, %v336
      %v338 = vmul.f32 %v333, %v337
      %vm339 = vweird.f32 %v332
      %vm340 = vweird.f32 %v333
      %vm341 = vmor %vm339, %vm340
      %v342 = vsel %vm341, %v333, %v338
      %v343 = vmul.f32 %v326, %v342
      %v344 = vadd.f32 %v313, 1.0
      %v345 = vperm.slane %v344, 1
      %v346 = vmul.f32 %v343, %v345
      %v347 = vperm.slane %v313, 0
      %v348 = vadd.f32 %v346, %v347
      %v349 = vpack.c.bf16 %v348, %v348
      %v350 = vld [vmem:[%s4] sm:$0xf]
      %v351 = vld [vmem:[%s4 + $0x4] sm:$0xf]
      %v352 = vld [vmem:[%s4 + $0x8] sm:$0xf]
      %v353 = vld [vmem:[%s4 + $0xc] sm:$0xf]
      %v354 = vld [vmem:[%s3 + $0x18] sm:$0x1]
      %v355 = vperm.slane %v354, 0
      %v360 = vunpack.c.l.b16 %v350
      %v361 = vunpack.c.l.b16 %v351
      %v362 = vunpack.c.l.b16 %v352
      %v363 = vunpack.c.l.b16 %v353
      %v364 = vpack.c.b16 %v361, %v360
      %v365 = vpack.c.b16 %v363, %v362
      %v369 = vsel %vm314, %v349, 0
      %371 = vmatpush.bf16.msra.mxu0 0
      %372 = vmatpush.bf16.msra.mxu0 0
      %373 = vmatpush.bf16.msra.mxu0 0
      %374 = vmatpush.bf16.msra.mxu0 0
      %375 = vmatpush.bf16.msra.mxu0 0
      %376 = vmatpush.bf16.msra.mxu0 0
      %377 = vmatpush.bf16.msra.mxu0 %v365
      %378 = vmatpush.bf16.msra.mxu0 %v364
      %379 = vmatmul.bf16.gmra.mxu0 %v369
      %v380 = vpop.f32.mrf.mxu0
      %v381 = vadd.f32 %v355, %v380
      %v382 = vpop.f32.mrf.mxu0
      %383 = vdwg.mxu0
      %v384 = vld [vmem:[%s4 + $0x10] sm:$0xf]
      %v385 = vld [vmem:[%s4 + $0x14] sm:$0xf]
      %v386 = vld [vmem:[%s4 + $0x18] sm:$0xf]
      %v387 = vld [vmem:[%s4 + $0x1c] sm:$0xf]
      %v388 = vld [vmem:[%s3 + $0x19] sm:$0x1]
      %v389 = vperm.slane %v388, 0
      %v394 = vunpack.c.l.b16 %v384
      %v395 = vunpack.c.l.b16 %v385
      %v396 = vunpack.c.l.b16 %v386
      %v397 = vunpack.c.l.b16 %v387
      %v398 = vpack.c.b16 %v395, %v394
      %v399 = vpack.c.b16 %v397, %v396
      %402 = vmatpush.bf16.msra.mxu0 0
      %403 = vmatpush.bf16.msra.mxu0 0
      %404 = vmatpush.bf16.msra.mxu0 0
      %405 = vmatpush.bf16.msra.mxu0 0
      %406 = vmatpush.bf16.msra.mxu0 0
      %407 = vmatpush.bf16.msra.mxu0 0
      %408 = vmatpush.bf16.msra.mxu0 %v399
      %409 = vmatpush.bf16.msra.mxu0 %v398
      %410 = vmatmul.bf16.gmra.mxu0 %v369
      %v411 = vpop.f32.mrf.mxu0
      %v412 = vadd.f32 %v389, %v411
      %v413 = vpop.f32.mrf.mxu0
      %414 = vdwg.mxu0
      %v415 = vld [vmem:[%s4 + $0x20] sm:$0xf]
      %v416 = vld [vmem:[%s4 + $0x24] sm:$0xf]
      %v417 = vld [vmem:[%s4 + $0x28] sm:$0xf]
      %v418 = vld [vmem:[%s4 + $0x2c] sm:$0xf]
      %v419 = vld [vmem:[%s3 + $0x1c] sm:$0x1]
      %v420 = vperm.slane %v419, 0
      %v425 = vunpack.c.l.b16 %v415
      %v426 = vunpack.c.l.b16 %v416
      %v427 = vunpack.c.l.b16 %v417
      %v428 = vunpack.c.l.b16 %v418
      %v429 = vpack.c.b16 %v426, %v425
      %v430 = vpack.c.b16 %v428, %v427
      %433 = vmatpush.bf16.msra.mxu0 0
      %434 = vmatpush.bf16.msra.mxu0 0
      %435 = vmatpush.bf16.msra.mxu0 0
      %436 = vmatpush.bf16.msra.mxu0 0
      %437 = vmatpush.bf16.msra.mxu0 0
      %438 = vmatpush.bf16.msra.mxu0 0
      %439 = vmatpush.bf16.msra.mxu0 %v430
      %440 = vmatpush.bf16.msra.mxu0 %v429
      %441 = vmatmul.bf16.gmra.mxu0 %v369
      %v442 = vpop.f32.mrf.mxu0
      %v443 = vadd.f32 %v420, %v442
      %v444 = vpop.f32.mrf.mxu0
      %445 = vdwg.mxu0
      %v446 = vld [vmem:[%s4 + $0x30] sm:$0xf]
      %v447 = vld [vmem:[%s4 + $0x34] sm:$0xf]
      %v448 = vld [vmem:[%s4 + $0x38] sm:$0xf]
      %v449 = vld [vmem:[%s4 + $0x3c] sm:$0xf]
      %v450 = vld [vmem:[%s3 + $0x1d] sm:$0x1]
      %v451 = vperm.slane %v450, 0
      %v456 = vunpack.c.l.b16 %v446
      %v457 = vunpack.c.l.b16 %v447
      %v458 = vunpack.c.l.b16 %v448
      %v459 = vunpack.c.l.b16 %v449
      %v460 = vpack.c.b16 %v457, %v456
      %v461 = vpack.c.b16 %v459, %v458
      %464 = vmatpush.bf16.msra.mxu0 0
      %465 = vmatpush.bf16.msra.mxu0 0
      %466 = vmatpush.bf16.msra.mxu0 0
      %467 = vmatpush.bf16.msra.mxu0 0
      %468 = vmatpush.bf16.msra.mxu0 0
      %469 = vmatpush.bf16.msra.mxu0 0
      %470 = vmatpush.bf16.msra.mxu0 %v461
      %471 = vmatpush.bf16.msra.mxu0 %v460
      %472 = vmatmul.bf16.gmra.mxu0 %v369
      %v473 = vpop.f32.mrf.mxu0
      %v474 = vadd.f32 %v451, %v473
      %v475 = vpop.f32.mrf.mxu0
      %476 = vdwg.mxu0
      %v477 = vld [vmem:[%s4 + $0x40] sm:$0xf]
      %v478 = vld [vmem:[%s4 + $0x44] sm:$0xf]
      %v479 = vld [vmem:[%s4 + $0x48] sm:$0xf]
      %v480 = vld [vmem:[%s4 + $0x4c] sm:$0xf]
      %v481 = vld [vmem:[%s3 + $0x20] sm:$0x1]
      %v482 = vperm.slane %v481, 0
      %v487 = vunpack.c.l.b16 %v477
      %v488 = vunpack.c.l.b16 %v478
      %v489 = vunpack.c.l.b16 %v479
      %v490 = vunpack.c.l.b16 %v480
      %v491 = vpack.c.b16 %v488, %v487
      %v492 = vpack.c.b16 %v490, %v489
      %495 = vmatpush.bf16.msra.mxu0 0
      %496 = vmatpush.bf16.msra.mxu0 0
      %497 = vmatpush.bf16.msra.mxu0 0
      %498 = vmatpush.bf16.msra.mxu0 0
      %499 = vmatpush.bf16.msra.mxu0 0
      %500 = vmatpush.bf16.msra.mxu0 0
      %501 = vmatpush.bf16.msra.mxu0 %v492
      %502 = vmatpush.bf16.msra.mxu0 %v491
      %503 = vmatmul.bf16.gmra.mxu0 %v369
      %v504 = vpop.f32.mrf.mxu0
      %v505 = vadd.f32 %v482, %v504
      %v506 = vpop.f32.mrf.mxu0
      %507 = vdwg.mxu0
      %v508 = vmul.f32 %v381, %v381
      %v509 = vsel %vm314, %v508, 0.0
      %510 = vadd.xlane.f32.xlu0 %v509
      %v511 = vpop.xlane.xlu0 %510
      %v512 = vmul.f32 %v511, %v324
      %v513 = vadd.f32 %v512, 1e-06
      %v514 = vrsqrt.pop %v513
      %v515 = vmul.f32 %v514, %v513
      %v516 = vmul.f32 %v515, %v514
      %v517 = vmul.f32 0.5, %v516
      %v518 = vsub.f32 1.5, %v517
      %v519 = vmul.f32 %v514, %v518
      %vm520 = vweird.f32 %v513
      %vm521 = vweird.f32 %v514
      %vm522 = vmor %vm520, %vm521
      %v523 = vsel %vm522, %v514, %v519
      %v524 = vmul.f32 %v443, %v443
      %v525 = vsel %vm314, %v524, 0.0
      %526 = vadd.xlane.f32.xlu0 %v525
      %v527 = vpop.xlane.xlu0 %526
      %v528 = vmul.f32 %v527, %v324
      %v529 = vadd.f32 %v528, 1e-06
      %v530 = vrsqrt.pop %v529
      %v531 = vmul.f32 %v530, %v529
      %v532 = vmul.f32 %v531, %v530
      %v533 = vmul.f32 0.5, %v532
      %v534 = vsub.f32 1.5, %v533
      %v535 = vmul.f32 %v530, %v534
      %vm536 = vweird.f32 %v529
      %vm537 = vweird.f32 %v530
      %vm538 = vmor %vm536, %vm537
      %v539 = vsel %vm538, %v530, %v535
      %v540 = vmul.f32 %v381, %v523
      %v541 = vld [vmem:[%s3 + $0x1a] sm:$0x1]
      %v542 = vperm.slane %v541, 0
      %v543 = vmul.f32 %v540, %v542
      %v544 = vmul.f32 %v412, %v523
      %v545 = vld [vmem:[%s3 + $0x1b] sm:$0x1]
      %v546 = vperm.slane %v545, 0
      %v547 = vmul.f32 %v544, %v546
      %v548 = vmul.f32 %v443, %v539
      %v549 = vld [vmem:[%s3 + $0x1e] sm:$0x1]
      %v550 = vperm.slane %v549, 0
      %v551 = vmul.f32 %v548, %v550
      %v552 = vmul.f32 %v474, %v539
      %v553 = vld [vmem:[%s3 + $0x1f] sm:$0x1]
      %v554 = vperm.slane %v553, 0
      %v555 = vmul.f32 %v552, %v554
      %v556 = vld [vmem:[%s3 + $0x8] sm:$0xff]
      %v557 = vld [vmem:[%s3 + $0x10] sm:$0xff]
      %v558 = vmul.f32 %v543, %v556
      %v559 = vmul.f32 %v547, %v557
      %v560 = vadd.f32 %v558, %v559
      %v561 = vmul.f32 %v551, %v556
      %v562 = vmul.f32 %v555, %v557
      %v563 = vadd.f32 %v561, %v562
      %565 = vrot.lane.b32.xlu0 %v560, 120
      %v566 = vpop.permute.xlu0 %565
      %568 = vrot.lane.b32.xlu0 %v560, 112
      %v569 = vpop.permute.xlu0 %568
      %571 = vrot.lane.b32.xlu0 %v560, 104
      %v572 = vpop.permute.xlu0 %571
      %v574 = vpack.c.bf16 %v560, %v560
      %v575 = vpack.c.bf16 %v566, %v566
      %v576 = vpack.c.bf16 %v569, %v569
      %v577 = vpack.c.bf16 %v572, %v572
      %579 = vrot.lane.b32.xlu0 %v563, 120
      %v580 = vpop.permute.xlu0 %579
      %582 = vrot.lane.b32.xlu0 %v563, 112
      %v583 = vpop.permute.xlu0 %582
      %585 = vrot.lane.b32.xlu0 %v563, 104
      %v586 = vpop.permute.xlu0 %585
      %v588 = vpack.c.bf16 %v563, %v563
      %v589 = vpack.c.bf16 %v580, %v580
      %v590 = vpack.c.bf16 %v583, %v583
      %v591 = vpack.c.bf16 %v586, %v586
      %593 = vrot.lane.b32.xlu0 %v505, 120
      %v594 = vpop.permute.xlu0 %593
      %596 = vrot.lane.b32.xlu0 %v505, 112
      %v597 = vpop.permute.xlu0 %596
      %599 = vrot.lane.b32.xlu0 %v505, 104
      %v600 = vpop.permute.xlu0 %599
      %v602 = vpack.c.bf16 %v505, %v505
      %v603 = vpack.c.bf16 %v594, %v594
      %v604 = vpack.c.bf16 %v597, %v597
      %v605 = vpack.c.bf16 %v600, %v600
      %vm606 = vcmask 64512
      %v608 = vsel %vm606, %v574, 0
      %v611 = vsel %vm606, %v588, 0
      %613 = vmatpush.bf16.xpose.msra.mxu0 0
      %614 = vmatpush.bf16.xpose.msra.mxu0 0
      %615 = vmatpush.bf16.xpose.msra.mxu0 0
      %616 = vmatpush.bf16.xpose.msra.mxu0 0
      %617 = vmatpush.bf16.xpose.msra.mxu0 0
      %618 = vmatpush.bf16.xpose.msra.mxu0 0
      %619 = vmatpush.bf16.xpose.msra.mxu0 0
      %620 = vmatpush.bf16.xpose.msra.mxu0 %v611
      %621 = vmatmul.bf16.gmra.mxu0 %v608
      %v622 = vpop.f32.mrf.mxu0
      %v623 = vadd.f32 0.0, %v622
      %v624 = vpop.f32.mrf.mxu0
      %625 = vdwg.mxu0
      %v627 = vsel %vm606, %v575, 0
      %v630 = vsel %vm606, %v589, 0
      %632 = vmatpush.bf16.xpose.msra.mxu0 0
      %633 = vmatpush.bf16.xpose.msra.mxu0 0
      %634 = vmatpush.bf16.xpose.msra.mxu0 0
      %635 = vmatpush.bf16.xpose.msra.mxu0 0
      %636 = vmatpush.bf16.xpose.msra.mxu0 0
      %637 = vmatpush.bf16.xpose.msra.mxu0 0
      %638 = vmatpush.bf16.xpose.msra.mxu0 0
      %639 = vmatpush.bf16.xpose.msra.mxu0 %v630
      %640 = vmatmul.bf16.gmra.mxu0 %v627
      %v641 = vpop.f32.mrf.mxu0
      %v642 = vadd.f32 0.0, %v641
      %v643 = vpop.f32.mrf.mxu0
      %644 = vdwg.mxu0
      %v646 = vsel %vm606, %v576, 0
      %v649 = vsel %vm606, %v590, 0
      %651 = vmatpush.bf16.xpose.msra.mxu0 0
      %652 = vmatpush.bf16.xpose.msra.mxu0 0
      %653 = vmatpush.bf16.xpose.msra.mxu0 0
      %654 = vmatpush.bf16.xpose.msra.mxu0 0
      %655 = vmatpush.bf16.xpose.msra.mxu0 0
      %656 = vmatpush.bf16.xpose.msra.mxu0 0
      %657 = vmatpush.bf16.xpose.msra.mxu0 0
      %658 = vmatpush.bf16.xpose.msra.mxu0 %v649
      %659 = vmatmul.bf16.gmra.mxu0 %v646
      %v660 = vpop.f32.mrf.mxu0
      %v661 = vadd.f32 0.0, %v660
      %v662 = vpop.f32.mrf.mxu0
      %663 = vdwg.mxu0
      %v665 = vsel %vm606, %v577, 0
      %v668 = vsel %vm606, %v591, 0
      %670 = vmatpush.bf16.xpose.msra.mxu0 0
      %671 = vmatpush.bf16.xpose.msra.mxu0 0
      %672 = vmatpush.bf16.xpose.msra.mxu0 0
      %673 = vmatpush.bf16.xpose.msra.mxu0 0
      %674 = vmatpush.bf16.xpose.msra.mxu0 0
      %675 = vmatpush.bf16.xpose.msra.mxu0 0
      %676 = vmatpush.bf16.xpose.msra.mxu0 0
      %677 = vmatpush.bf16.xpose.msra.mxu0 %v668
      %678 = vmatmul.bf16.gmra.mxu0 %v665
      %v679 = vpop.f32.mrf.mxu0
      %v680 = vadd.f32 0.0, %v679
      %v681 = vpop.f32.mrf.mxu0
      %682 = vdwg.mxu0
      %v683 = vsel %vm606, %v623, -inf
      %684 = vmax.xlane.f32.xlu0 %v683
      %v685 = vpop.xlane.xlu0 %684
      %v686 = vsel %vm606, %v642, -inf
      %687 = vmax.xlane.f32.xlu0 %v686
      %v688 = vpop.xlane.xlu0 %687
      %v689 = vsel %vm606, %v661, -inf
      %690 = vmax.xlane.f32.xlu0 %v689
      %v691 = vpop.xlane.xlu0 %690
      %v692 = vsel %vm606, %v680, -inf
      %693 = vmax.xlane.f32.xlu0 %v692
      %v694 = vpop.xlane.xlu0 %693
      %v695 = vsub.f32 %v623, %v685
      %v696 = vsub.f32 %v642, %v688
      %v697 = vsub.f32 %v661, %v691
      %v698 = vsub.f32 %v680, %v694
      %v699 = vmul.f32 %v695, 1.442695
      %v700 = vpow.pop %v699
      %v701 = vmul.f32 %v696, 1.442695
      %v702 = vpow.pop %v701
      %v703 = vmul.f32 %v697, 1.442695
      %v704 = vpow.pop %v703
      %v705 = vmul.f32 %v698, 1.442695
      %v706 = vpow.pop %v705
      %v707 = vsel %vm606, %v700, 0.0
      %708 = vadd.xlane.f32.xlu0 %v707
      %v709 = vpop.xlane.xlu0 %708
      %v710 = vsel %vm606, %v702, 0.0
      %711 = vadd.xlane.f32.xlu0 %v710
      %v712 = vpop.xlane.xlu0 %711
      %v713 = vsel %vm606, %v704, 0.0
      %714 = vadd.xlane.f32.xlu0 %v713
      %v715 = vpop.xlane.xlu0 %714
      %v716 = vsel %vm606, %v706, 0.0
      %717 = vadd.xlane.f32.xlu0 %v716
      %v718 = vpop.xlane.xlu0 %717
      %v719 = vrcp.pop %v709
      %v720 = vmul.f32 %v709, %v719
      %v721 = vsub.f32 1.0, %v720
      %v722 = vmul.f32 %v719, %v721
      %v723 = vadd.f32 %v719, %v722
      %vm724 = vweird.f32 %v709
      %vm725 = vweird.f32 %v719
      %vm726 = vmor %vm724, %vm725
      %v727 = vsel %vm726, %v719, %v723
      %v728 = vand.u32 2147483647, %v709
      %vm729 = vcmp.eq.f32.partialorder %v728, 8.507059e+37
      %v730 = vand.u32 %v709, 2147483648
      %v731 = vor.u32 1.1754944e-38, %v730
      %v732 = vsel %vm729, %v731, %v727
      %v733 = vmul.f32 %v700, %v732
      %v734 = vrcp.pop %v712
      %v735 = vmul.f32 %v712, %v734
      %v736 = vsub.f32 1.0, %v735
      %v737 = vmul.f32 %v734, %v736
      %v738 = vadd.f32 %v734, %v737
      %vm739 = vweird.f32 %v712
      %vm740 = vweird.f32 %v734
      %vm741 = vmor %vm739, %vm740
      %v742 = vsel %vm741, %v734, %v738
      %v743 = vand.u32 2147483647, %v712
      %vm744 = vcmp.eq.f32.partialorder %v743, 8.507059e+37
      %v745 = vand.u32 %v712, 2147483648
      %v746 = vor.u32 1.1754944e-38, %v745
      %v747 = vsel %vm744, %v746, %v742
      %v748 = vmul.f32 %v702, %v747
      %v749 = vrcp.pop %v715
      %v750 = vmul.f32 %v715, %v749
      %v751 = vsub.f32 1.0, %v750
      %v752 = vmul.f32 %v749, %v751
      %v753 = vadd.f32 %v749, %v752
      %vm754 = vweird.f32 %v715
      %vm755 = vweird.f32 %v749
      %vm756 = vmor %vm754, %vm755
      %v757 = vsel %vm756, %v749, %v753
      %v758 = vand.u32 2147483647, %v715
      %vm759 = vcmp.eq.f32.partialorder %v758, 8.507059e+37
      %v760 = vand.u32 %v715, 2147483648
      %v761 = vor.u32 1.1754944e-38, %v760
      %v762 = vsel %vm759, %v761, %v757
      %v763 = vmul.f32 %v704, %v762
      %v764 = vrcp.pop %v718
      %v765 = vmul.f32 %v718, %v764
      %v766 = vsub.f32 1.0, %v765
      %v767 = vmul.f32 %v764, %v766
      %v768 = vadd.f32 %v764, %v767
      %vm769 = vweird.f32 %v718
      %vm770 = vweird.f32 %v764
      %vm771 = vmor %vm769, %vm770
      %v772 = vsel %vm771, %v764, %v768
      %v773 = vand.u32 2147483647, %v718
      %vm774 = vcmp.eq.f32.partialorder %v773, 8.507059e+37
      %v775 = vand.u32 %v718, 2147483648
      %v776 = vor.u32 1.1754944e-38, %v775
      %v777 = vsel %vm774, %v776, %v772
      %v778 = vmul.f32 %v706, %v777
      %v779 = vpack.c.bf16 %v733, %v733
      %v780 = vpack.c.bf16 %v748, %v748
      %v781 = vpack.c.bf16 %v763, %v763
      %v782 = vpack.c.bf16 %v778, %v778
      %v784 = vsel %vm606, %v779, 0
      %vm786 = vcmask 1043456
      %v788 = vsel %vm786, %v602, 0
      %790 = vmatpush.bf16.msra.mxu0 0
      %791 = vmatpush.bf16.msra.mxu0 0
      %792 = vmatpush.bf16.msra.mxu0 0
      %793 = vmatpush.bf16.msra.mxu0 0
      %794 = vmatpush.bf16.msra.mxu0 0
      %795 = vmatpush.bf16.msra.mxu0 0
      %796 = vmatpush.bf16.msra.mxu0 0
      %797 = vmatpush.bf16.msra.mxu0 %v788
      %798 = vmatmul.bf16.gmra.mxu0 %v784
      %v799 = vpop.f32.mrf.mxu0
      %v800 = vadd.f32 0.0, %v799
      %v801 = vpop.f32.mrf.mxu0
      %802 = vdwg.mxu0
      %v804 = vsel %vm606, %v780, 0
      %v807 = vsel %vm786, %v603, 0
      %809 = vmatpush.bf16.msra.mxu0 0
      %810 = vmatpush.bf16.msra.mxu0 0
      %811 = vmatpush.bf16.msra.mxu0 0
      %812 = vmatpush.bf16.msra.mxu0 0
      %813 = vmatpush.bf16.msra.mxu0 0
      %814 = vmatpush.bf16.msra.mxu0 0
      %815 = vmatpush.bf16.msra.mxu0 0
      %816 = vmatpush.bf16.msra.mxu0 %v807
      %817 = vmatmul.bf16.gmra.mxu0 %v804
      %v818 = vpop.f32.mrf.mxu0
      %v819 = vadd.f32 0.0, %v818
      %v820 = vpop.f32.mrf.mxu0
      %821 = vdwg.mxu0
      %v823 = vsel %vm606, %v781, 0
      %v826 = vsel %vm786, %v604, 0
      %828 = vmatpush.bf16.msra.mxu0 0
      %829 = vmatpush.bf16.msra.mxu0 0
      %830 = vmatpush.bf16.msra.mxu0 0
      %831 = vmatpush.bf16.msra.mxu0 0
      %832 = vmatpush.bf16.msra.mxu0 0
      %833 = vmatpush.bf16.msra.mxu0 0
      %834 = vmatpush.bf16.msra.mxu0 0
      %835 = vmatpush.bf16.msra.mxu0 %v826
      %836 = vmatmul.bf16.gmra.mxu0 %v823
      %v837 = vpop.f32.mrf.mxu0
      %v838 = vadd.f32 0.0, %v837
      %v839 = vpop.f32.mrf.mxu0
      %840 = vdwg.mxu0
      %v842 = vsel %vm606, %v782, 0
      %v845 = vsel %vm786, %v605, 0
      %847 = vmatpush.bf16.msra.mxu0 0
      %848 = vmatpush.bf16.msra.mxu0 0
      %849 = vmatpush.bf16.msra.mxu0 0
      %850 = vmatpush.bf16.msra.mxu0 0
      %851 = vmatpush.bf16.msra.mxu0 0
      %852 = vmatpush.bf16.msra.mxu0 0
      %853 = vmatpush.bf16.msra.mxu0 0
      %854 = vmatpush.bf16.msra.mxu0 %v845
      %855 = vmatmul.bf16.gmra.mxu0 %v842
      %v856 = vpop.f32.mrf.mxu0
      %v857 = vadd.f32 0.0, %v856
      %v858 = vpop.f32.mrf.mxu0
      %859 = vdwg.mxu0
      %861 = vrot.lane.b32.xlu0 %v819, 8
      %v862 = vpop.permute.xlu0 %861
      %865 = vrot.lane.b32.xlu0 %v838, 16
      %v866 = vpop.permute.xlu0 %865
      %869 = vrot.lane.b32.xlu0 %v857, 24
      %v870 = vpop.permute.xlu0 %869
      %v872 = vsel %vm606, %v800, %v862
      %vm873 = vcmask 130048
      %v874 = vsel %vm873, %v872, %v866
      %vm875 = vcmask 195584
      %v876 = vsel %vm875, %v874, %v870
      %v877 = vpack.c.bf16 %v876, %v876
      %v878 = vld [vmem:[%s4 + $0x50] sm:$0xf]
      %v879 = vld [vmem:[%s4 + $0x54] sm:$0xf]
      %v880 = vld [vmem:[%s4 + $0x58] sm:$0xf]
      %v881 = vld [vmem:[%s4 + $0x5c] sm:$0xf]
      %v882 = vld [vmem:[%s3 + $0x21] sm:$0x1]
      %v883 = vperm.slane %v882, 0
      %v888 = vunpack.c.l.b16 %v878
      %v889 = vunpack.c.l.b16 %v879
      %v890 = vunpack.c.l.b16 %v880
      %v891 = vunpack.c.l.b16 %v881
      %v892 = vpack.c.b16 %v889, %v888
      %v893 = vpack.c.b16 %v891, %v890
      %v897 = vsel %vm314, %v877, 0
      %899 = vmatpush.bf16.msra.mxu0 0
      %900 = vmatpush.bf16.msra.mxu0 0
      %901 = vmatpush.bf16.msra.mxu0 0
      %902 = vmatpush.bf16.msra.mxu0 0
      %903 = vmatpush.bf16.msra.mxu0 0
      %904 = vmatpush.bf16.msra.mxu0 0
      %905 = vmatpush.bf16.msra.mxu0 %v893
      %906 = vmatpush.bf16.msra.mxu0 %v892
      %907 = vmatmul.bf16.gmra.mxu0 %v897
      %v908 = vpop.f32.mrf.mxu0
      %v909 = vadd.f32 %v883, %v908
      %v910 = vpop.f32.mrf.mxu0
      %911 = vdwg.mxu0
      %v912 = vperm.slane %v313, 2
      %v913 = vmul.f32 %v909, %v912
      %v914 = vadd.f32 %v309, %v913
      %v915 = vpack.c.bf16 %v914, %v914
      %v916 = vpack.c.bf16 %v310, %v310
      %v917 = vld [vmem:[%s4 + $0x60] sm:$0xf]
      %v918 = vld [vmem:[%s4 + $0x64] sm:$0xf]
      %v919 = vld [vmem:[%s4 + $0x68] sm:$0xf]
      %v920 = vld [vmem:[%s4 + $0x6c] sm:$0xf]
      %v921 = vld [vmem:[%s3 + $0x22] sm:$0x1]
      %v922 = vperm.slane %v921, 0
      %v927 = vunpack.c.l.b16 %v917
      %v928 = vunpack.c.l.b16 %v918
      %v929 = vunpack.c.l.b16 %v919
      %v930 = vunpack.c.l.b16 %v920
      %v931 = vpack.c.b16 %v928, %v927
      %v932 = vpack.c.b16 %v930, %v929
      %v936 = vsel %vm314, %v915, 0
      %938 = vmatpush.bf16.msra.mxu0 0
      %939 = vmatpush.bf16.msra.mxu0 0
      %940 = vmatpush.bf16.msra.mxu0 0
      %941 = vmatpush.bf16.msra.mxu0 0
      %942 = vmatpush.bf16.msra.mxu0 0
      %943 = vmatpush.bf16.msra.mxu0 0
      %944 = vmatpush.bf16.msra.mxu0 %v932
      %945 = vmatpush.bf16.msra.mxu0 %v931
      %946 = vmatmul.bf16.gmra.mxu0 %v936
      %v947 = vpop.f32.mrf.mxu0
      %v948 = vadd.f32 %v922, %v947
      %v949 = vpop.f32.mrf.mxu0
      %950 = vdwg.mxu0
      %v951 = vld [vmem:[%s4 + $0x70] sm:$0xf]
      %v952 = vld [vmem:[%s4 + $0x74] sm:$0xf]
      %v953 = vld [vmem:[%s4 + $0x78] sm:$0xf]
      %v954 = vld [vmem:[%s4 + $0x7c] sm:$0xf]
      %v955 = vld [vmem:[%s3 + $0x24] sm:$0x1]
      %v956 = vperm.slane %v955, 0
      %v961 = vunpack.c.l.b16 %v951
      %v962 = vunpack.c.l.b16 %v952
      %v963 = vunpack.c.l.b16 %v953
      %v964 = vunpack.c.l.b16 %v954
      %v965 = vpack.c.b16 %v962, %v961
      %v966 = vpack.c.b16 %v964, %v963
      %v970 = vsel %vm314, %v916, 0
      %972 = vmatpush.bf16.msra.mxu0 0
      %973 = vmatpush.bf16.msra.mxu0 0
      %974 = vmatpush.bf16.msra.mxu0 0
      %975 = vmatpush.bf16.msra.mxu0 0
      %976 = vmatpush.bf16.msra.mxu0 0
      %977 = vmatpush.bf16.msra.mxu0 0
      %978 = vmatpush.bf16.msra.mxu0 %v966
      %979 = vmatpush.bf16.msra.mxu0 %v965
      %980 = vmatmul.bf16.gmra.mxu0 %v970
      %v981 = vpop.f32.mrf.mxu0
      %v982 = vadd.f32 %v956, %v981
      %v983 = vpop.f32.mrf.mxu0
      %984 = vdwg.mxu0
      %v985 = vld [vmem:[%s4 + $0x80] sm:$0xf]
      %v986 = vld [vmem:[%s4 + $0x84] sm:$0xf]
      %v987 = vld [vmem:[%s4 + $0x88] sm:$0xf]
      %v988 = vld [vmem:[%s4 + $0x8c] sm:$0xf]
      %v989 = vld [vmem:[%s3 + $0x26] sm:$0x1]
      %v990 = vperm.slane %v989, 0
      %v995 = vunpack.c.l.b16 %v985
      %v996 = vunpack.c.l.b16 %v986
      %v997 = vunpack.c.l.b16 %v987
      %v998 = vunpack.c.l.b16 %v988
      %v999 = vpack.c.b16 %v996, %v995
      %v1000 = vpack.c.b16 %v998, %v997
      %1003 = vmatpush.bf16.msra.mxu0 0
      %1004 = vmatpush.bf16.msra.mxu0 0
      %1005 = vmatpush.bf16.msra.mxu0 0
      %1006 = vmatpush.bf16.msra.mxu0 0
      %1007 = vmatpush.bf16.msra.mxu0 0
      %1008 = vmatpush.bf16.msra.mxu0 0
      %1009 = vmatpush.bf16.msra.mxu0 %v1000
      %1010 = vmatpush.bf16.msra.mxu0 %v999
      %1011 = vmatmul.bf16.gmra.mxu0 %v970
      %v1012 = vpop.f32.mrf.mxu0
      %v1013 = vadd.f32 %v990, %v1012
      %v1014 = vpop.f32.mrf.mxu0
      %1015 = vdwg.mxu0
      %v1016 = vmul.f32 %v948, %v948
      %v1017 = vsel %vm314, %v1016, 0.0
      %1018 = vadd.xlane.f32.xlu0 %v1017
      %v1019 = vpop.xlane.xlu0 %1018
      %v1020 = vmul.f32 %v1019, %v324
      %v1021 = vadd.f32 %v1020, 1e-06
      %v1022 = vrsqrt.pop %v1021
      %v1023 = vmul.f32 %v1022, %v1021
      %v1024 = vmul.f32 %v1023, %v1022
      %v1025 = vmul.f32 0.5, %v1024
      %v1026 = vsub.f32 1.5, %v1025
      %v1027 = vmul.f32 %v1022, %v1026
      %vm1028 = vweird.f32 %v1021
      %vm1029 = vweird.f32 %v1022
      %vm1030 = vmor %vm1028, %vm1029
      %v1031 = vsel %vm1030, %v1022, %v1027
      %v1032 = vmul.f32 %v982, %v982
      %v1033 = vsel %vm314, %v1032, 0.0
      %1034 = vadd.xlane.f32.xlu0 %v1033
      %v1035 = vpop.xlane.xlu0 %1034
      %v1036 = vmul.f32 %v1035, %v324
      %v1037 = vadd.f32 %v1036, 1e-06
      %v1038 = vrsqrt.pop %v1037
      %v1039 = vmul.f32 %v1038, %v1037
      %v1040 = vmul.f32 %v1039, %v1038
      %v1041 = vmul.f32 0.5, %v1040
      %v1042 = vsub.f32 1.5, %v1041
      %v1043 = vmul.f32 %v1038, %v1042
      %vm1044 = vweird.f32 %v1037
      %vm1045 = vweird.f32 %v1038
      %vm1046 = vmor %vm1044, %vm1045
      %v1047 = vsel %vm1046, %v1038, %v1043
      %v1048 = vmul.f32 %v948, %v1031
      %v1049 = vld [vmem:[%s3 + $0x23] sm:$0x1]
      %v1050 = vperm.slane %v1049, 0
      %v1051 = vmul.f32 %v1048, %v1050
      %v1052 = vmul.f32 %v982, %v1047
      %v1053 = vld [vmem:[%s3 + $0x25] sm:$0x1]
      %v1054 = vperm.slane %v1053, 0
      %v1055 = vmul.f32 %v1052, %v1054
      %1057 = vrot.lane.b32.xlu0 %v1051, 120
      %v1058 = vpop.permute.xlu0 %1057
      %1060 = vrot.lane.b32.xlu0 %v1051, 112
      %v1061 = vpop.permute.xlu0 %1060
      %1063 = vrot.lane.b32.xlu0 %v1051, 104
      %v1064 = vpop.permute.xlu0 %1063
      %v1066 = vpack.c.bf16 %v1051, %v1051
      %v1067 = vpack.c.bf16 %v1058, %v1058
      %v1068 = vpack.c.bf16 %v1061, %v1061
      %v1069 = vpack.c.bf16 %v1064, %v1064
      %1071 = vrot.lane.b32.xlu0 %v1055, 120
      %v1072 = vpop.permute.xlu0 %1071
      %1074 = vrot.lane.b32.xlu0 %v1055, 112
      %v1075 = vpop.permute.xlu0 %1074
      %1077 = vrot.lane.b32.xlu0 %v1055, 104
      %v1078 = vpop.permute.xlu0 %1077
      %v1080 = vpack.c.bf16 %v1055, %v1055
      %v1081 = vpack.c.bf16 %v1072, %v1072
      %v1082 = vpack.c.bf16 %v1075, %v1075
      %v1083 = vpack.c.bf16 %v1078, %v1078
      %1085 = vrot.lane.b32.xlu0 %v1013, 120
      %v1086 = vpop.permute.xlu0 %1085
      %1088 = vrot.lane.b32.xlu0 %v1013, 112
      %v1089 = vpop.permute.xlu0 %1088
      %1091 = vrot.lane.b32.xlu0 %v1013, 104
      %v1092 = vpop.permute.xlu0 %1091
      %v1094 = vpack.c.bf16 %v1013, %v1013
      %v1095 = vpack.c.bf16 %v1086, %v1086
      %v1096 = vpack.c.bf16 %v1089, %v1089
      %v1097 = vpack.c.bf16 %v1092, %v1092
      %v1099 = vsel %vm606, %v1066, 0
      %v1102 = vsel %vm606, %v1080, 0
      %1104 = vmatpush.bf16.xpose.msra.mxu0 0
      %1105 = vmatpush.bf16.xpose.msra.mxu0 0
      %1106 = vmatpush.bf16.xpose.msra.mxu0 0
      %1107 = vmatpush.bf16.xpose.msra.mxu0 0
      %1108 = vmatpush.bf16.xpose.msra.mxu0 0
      %1109 = vmatpush.bf16.xpose.msra.mxu0 0
      %1110 = vmatpush.bf16.xpose.msra.mxu0 0
      %1111 = vmatpush.bf16.xpose.msra.mxu0 %v1102
      %1112 = vmatmul.bf16.gmra.mxu0 %v1099
      %v1113 = vpop.f32.mrf.mxu0
      %v1114 = vadd.f32 0.0, %v1113
      %v1115 = vpop.f32.mrf.mxu0
      %1116 = vdwg.mxu0
      %v1118 = vsel %vm606, %v1067, 0
      %v1121 = vsel %vm606, %v1081, 0
      %1123 = vmatpush.bf16.xpose.msra.mxu0 0
      %1124 = vmatpush.bf16.xpose.msra.mxu0 0
      %1125 = vmatpush.bf16.xpose.msra.mxu0 0
      %1126 = vmatpush.bf16.xpose.msra.mxu0 0
      %1127 = vmatpush.bf16.xpose.msra.mxu0 0
      %1128 = vmatpush.bf16.xpose.msra.mxu0 0
      %1129 = vmatpush.bf16.xpose.msra.mxu0 0
      %1130 = vmatpush.bf16.xpose.msra.mxu0 %v1121
      %1131 = vmatmul.bf16.gmra.mxu0 %v1118
      %v1132 = vpop.f32.mrf.mxu0
      %v1133 = vadd.f32 0.0, %v1132
      %v1134 = vpop.f32.mrf.mxu0
      %1135 = vdwg.mxu0
      %v1137 = vsel %vm606, %v1068, 0
      %v1140 = vsel %vm606, %v1082, 0
      %1142 = vmatpush.bf16.xpose.msra.mxu0 0
      %1143 = vmatpush.bf16.xpose.msra.mxu0 0
      %1144 = vmatpush.bf16.xpose.msra.mxu0 0
      %1145 = vmatpush.bf16.xpose.msra.mxu0 0
      %1146 = vmatpush.bf16.xpose.msra.mxu0 0
      %1147 = vmatpush.bf16.xpose.msra.mxu0 0
      %1148 = vmatpush.bf16.xpose.msra.mxu0 0
      %1149 = vmatpush.bf16.xpose.msra.mxu0 %v1140
      %1150 = vmatmul.bf16.gmra.mxu0 %v1137
      %v1151 = vpop.f32.mrf.mxu0
      %v1152 = vadd.f32 0.0, %v1151
      %v1153 = vpop.f32.mrf.mxu0
      %1154 = vdwg.mxu0
      %v1156 = vsel %vm606, %v1069, 0
      %v1159 = vsel %vm606, %v1083, 0
      %1161 = vmatpush.bf16.xpose.msra.mxu0 0
      %1162 = vmatpush.bf16.xpose.msra.mxu0 0
      %1163 = vmatpush.bf16.xpose.msra.mxu0 0
      %1164 = vmatpush.bf16.xpose.msra.mxu0 0
      %1165 = vmatpush.bf16.xpose.msra.mxu0 0
      %1166 = vmatpush.bf16.xpose.msra.mxu0 0
      %1167 = vmatpush.bf16.xpose.msra.mxu0 0
      %1168 = vmatpush.bf16.xpose.msra.mxu0 %v1159
      %1169 = vmatmul.bf16.gmra.mxu0 %v1156
      %v1170 = vpop.f32.mrf.mxu0
      %v1171 = vadd.f32 0.0, %v1170
      %v1172 = vpop.f32.mrf.mxu0
      %1173 = vdwg.mxu0
      %v1174 = vsel %vm606, %v1114, -inf
      %1175 = vmax.xlane.f32.xlu0 %v1174
      %v1176 = vpop.xlane.xlu0 %1175
      %v1177 = vsel %vm606, %v1133, -inf
      %1178 = vmax.xlane.f32.xlu0 %v1177
      %v1179 = vpop.xlane.xlu0 %1178
      %v1180 = vsel %vm606, %v1152, -inf
      %1181 = vmax.xlane.f32.xlu0 %v1180
      %v1182 = vpop.xlane.xlu0 %1181
      %v1183 = vsel %vm606, %v1171, -inf
      %1184 = vmax.xlane.f32.xlu0 %v1183
      %v1185 = vpop.xlane.xlu0 %1184
      %v1186 = vsub.f32 %v1114, %v1176
      %v1187 = vsub.f32 %v1133, %v1179
      %v1188 = vsub.f32 %v1152, %v1182
      %v1189 = vsub.f32 %v1171, %v1185
      %v1190 = vmul.f32 %v1186, 1.442695
      %v1191 = vpow.pop %v1190
      %v1192 = vmul.f32 %v1187, 1.442695
      %v1193 = vpow.pop %v1192
      %v1194 = vmul.f32 %v1188, 1.442695
      %v1195 = vpow.pop %v1194
      %v1196 = vmul.f32 %v1189, 1.442695
      %v1197 = vpow.pop %v1196
      %v1198 = vsel %vm606, %v1191, 0.0
      %1199 = vadd.xlane.f32.xlu0 %v1198
      %v1200 = vpop.xlane.xlu0 %1199
      %v1201 = vsel %vm606, %v1193, 0.0
      %1202 = vadd.xlane.f32.xlu0 %v1201
      %v1203 = vpop.xlane.xlu0 %1202
      %v1204 = vsel %vm606, %v1195, 0.0
      %1205 = vadd.xlane.f32.xlu0 %v1204
      %v1206 = vpop.xlane.xlu0 %1205
      %v1207 = vsel %vm606, %v1197, 0.0
      %1208 = vadd.xlane.f32.xlu0 %v1207
      %v1209 = vpop.xlane.xlu0 %1208
      %v1210 = vrcp.pop %v1200
      %v1211 = vmul.f32 %v1200, %v1210
      %v1212 = vsub.f32 1.0, %v1211
      %v1213 = vmul.f32 %v1210, %v1212
      %v1214 = vadd.f32 %v1210, %v1213
      %vm1215 = vweird.f32 %v1200
      %vm1216 = vweird.f32 %v1210
      %vm1217 = vmor %vm1215, %vm1216
      %v1218 = vsel %vm1217, %v1210, %v1214
      %v1219 = vand.u32 2147483647, %v1200
      %vm1220 = vcmp.eq.f32.partialorder %v1219, 8.507059e+37
      %v1221 = vand.u32 %v1200, 2147483648
      %v1222 = vor.u32 1.1754944e-38, %v1221
      %v1223 = vsel %vm1220, %v1222, %v1218
      %v1224 = vmul.f32 %v1191, %v1223
      %v1225 = vrcp.pop %v1203
      %v1226 = vmul.f32 %v1203, %v1225
      %v1227 = vsub.f32 1.0, %v1226
      %v1228 = vmul.f32 %v1225, %v1227
      %v1229 = vadd.f32 %v1225, %v1228
      %vm1230 = vweird.f32 %v1203
      %vm1231 = vweird.f32 %v1225
      %vm1232 = vmor %vm1230, %vm1231
      %v1233 = vsel %vm1232, %v1225, %v1229
      %v1234 = vand.u32 2147483647, %v1203
      %vm1235 = vcmp.eq.f32.partialorder %v1234, 8.507059e+37
      %v1236 = vand.u32 %v1203, 2147483648
      %v1237 = vor.u32 1.1754944e-38, %v1236
      %v1238 = vsel %vm1235, %v1237, %v1233
      %v1239 = vmul.f32 %v1193, %v1238
      %v1240 = vrcp.pop %v1206
      %v1241 = vmul.f32 %v1206, %v1240
      %v1242 = vsub.f32 1.0, %v1241
      %v1243 = vmul.f32 %v1240, %v1242
      %v1244 = vadd.f32 %v1240, %v1243
      %vm1245 = vweird.f32 %v1206
      %vm1246 = vweird.f32 %v1240
      %vm1247 = vmor %vm1245, %vm1246
      %v1248 = vsel %vm1247, %v1240, %v1244
      %v1249 = vand.u32 2147483647, %v1206
      %vm1250 = vcmp.eq.f32.partialorder %v1249, 8.507059e+37
      %v1251 = vand.u32 %v1206, 2147483648
      %v1252 = vor.u32 1.1754944e-38, %v1251
      %v1253 = vsel %vm1250, %v1252, %v1248
      %v1254 = vmul.f32 %v1195, %v1253
      %v1255 = vrcp.pop %v1209
      %v1256 = vmul.f32 %v1209, %v1255
      %v1257 = vsub.f32 1.0, %v1256
      %v1258 = vmul.f32 %v1255, %v1257
      %v1259 = vadd.f32 %v1255, %v1258
      %vm1260 = vweird.f32 %v1209
      %vm1261 = vweird.f32 %v1255
      %vm1262 = vmor %vm1260, %vm1261
      %v1263 = vsel %vm1262, %v1255, %v1259
      %v1264 = vand.u32 2147483647, %v1209
      %vm1265 = vcmp.eq.f32.partialorder %v1264, 8.507059e+37
      %v1266 = vand.u32 %v1209, 2147483648
      %v1267 = vor.u32 1.1754944e-38, %v1266
      %v1268 = vsel %vm1265, %v1267, %v1263
      %v1269 = vmul.f32 %v1197, %v1268
      %v1270 = vpack.c.bf16 %v1224, %v1224
      %v1271 = vpack.c.bf16 %v1239, %v1239
      %v1272 = vpack.c.bf16 %v1254, %v1254
      %v1273 = vpack.c.bf16 %v1269, %v1269
      %v1275 = vsel %vm606, %v1270, 0
      %v1278 = vsel %vm786, %v1094, 0
      %1280 = vmatpush.bf16.msra.mxu0 0
      %1281 = vmatpush.bf16.msra.mxu0 0
      %1282 = vmatpush.bf16.msra.mxu0 0
      %1283 = vmatpush.bf16.msra.mxu0 0
      %1284 = vmatpush.bf16.msra.mxu0 0
      %1285 = vmatpush.bf16.msra.mxu0 0
      %1286 = vmatpush.bf16.msra.mxu0 0
      %1287 = vmatpush.bf16.msra.mxu0 %v1278
      %1288 = vmatmul.bf16.gmra.mxu0 %v1275
      %v1289 = vpop.f32.mrf.mxu0
      %v1290 = vadd.f32 0.0, %v1289
      %v1291 = vpop.f32.mrf.mxu0
      %1292 = vdwg.mxu0
      %v1294 = vsel %vm606, %v1271, 0
      %v1297 = vsel %vm786, %v1095, 0
      %1299 = vmatpush.bf16.msra.mxu0 0
      %1300 = vmatpush.bf16.msra.mxu0 0
      %1301 = vmatpush.bf16.msra.mxu0 0
      %1302 = vmatpush.bf16.msra.mxu0 0
      %1303 = vmatpush.bf16.msra.mxu0 0
      %1304 = vmatpush.bf16.msra.mxu0 0
      %1305 = vmatpush.bf16.msra.mxu0 0
      %1306 = vmatpush.bf16.msra.mxu0 %v1297
      %1307 = vmatmul.bf16.gmra.mxu0 %v1294
      %v1308 = vpop.f32.mrf.mxu0
      %v1309 = vadd.f32 0.0, %v1308
      %v1310 = vpop.f32.mrf.mxu0
      %1311 = vdwg.mxu0
      %v1313 = vsel %vm606, %v1272, 0
      %v1316 = vsel %vm786, %v1096, 0
      %1318 = vmatpush.bf16.msra.mxu0 0
      %1319 = vmatpush.bf16.msra.mxu0 0
      %1320 = vmatpush.bf16.msra.mxu0 0
      %1321 = vmatpush.bf16.msra.mxu0 0
      %1322 = vmatpush.bf16.msra.mxu0 0
      %1323 = vmatpush.bf16.msra.mxu0 0
      %1324 = vmatpush.bf16.msra.mxu0 0
      %1325 = vmatpush.bf16.msra.mxu0 %v1316
      %1326 = vmatmul.bf16.gmra.mxu0 %v1313
      %v1327 = vpop.f32.mrf.mxu0
      %v1328 = vadd.f32 0.0, %v1327
      %v1329 = vpop.f32.mrf.mxu0
      %1330 = vdwg.mxu0
      %v1332 = vsel %vm606, %v1273, 0
      %v1335 = vsel %vm786, %v1097, 0
      %1337 = vmatpush.bf16.msra.mxu0 0
      %1338 = vmatpush.bf16.msra.mxu0 0
      %1339 = vmatpush.bf16.msra.mxu0 0
      %1340 = vmatpush.bf16.msra.mxu0 0
      %1341 = vmatpush.bf16.msra.mxu0 0
      %1342 = vmatpush.bf16.msra.mxu0 0
      %1343 = vmatpush.bf16.msra.mxu0 0
      %1344 = vmatpush.bf16.msra.mxu0 %v1335
      %1345 = vmatmul.bf16.gmra.mxu0 %v1332
      %v1346 = vpop.f32.mrf.mxu0
      %v1347 = vadd.f32 0.0, %v1346
      %v1348 = vpop.f32.mrf.mxu0
      %1349 = vdwg.mxu0
      %1351 = vrot.lane.b32.xlu0 %v1309, 8
      %v1352 = vpop.permute.xlu0 %1351
      %1355 = vrot.lane.b32.xlu0 %v1328, 16
      %v1356 = vpop.permute.xlu0 %1355
      %1359 = vrot.lane.b32.xlu0 %v1347, 24
      %v1360 = vpop.permute.xlu0 %1359
      %v1362 = vsel %vm606, %v1290, %v1352
      %v1363 = vsel %vm873, %v1362, %v1356
      %v1364 = vsel %vm875, %v1363, %v1360
      %v1365 = vpack.c.bf16 %v1364, %v1364
      %v1366 = vld [vmem:[%s4 + $0x90] sm:$0xf]
      %v1367 = vld [vmem:[%s4 + $0x94] sm:$0xf]
      %v1368 = vld [vmem:[%s4 + $0x98] sm:$0xf]
      %v1369 = vld [vmem:[%s4 + $0x9c] sm:$0xf]
      %v1370 = vld [vmem:[%s3 + $0x27] sm:$0x1]
      %v1371 = vperm.slane %v1370, 0
      %v1376 = vunpack.c.l.b16 %v1366
      %v1377 = vunpack.c.l.b16 %v1367
      %v1378 = vunpack.c.l.b16 %v1368
      %v1379 = vunpack.c.l.b16 %v1369
      %v1380 = vpack.c.b16 %v1377, %v1376
      %v1381 = vpack.c.b16 %v1379, %v1378
      %v1385 = vsel %vm314, %v1365, 0
      %1387 = vmatpush.bf16.msra.mxu0 0
      %1388 = vmatpush.bf16.msra.mxu0 0
      %1389 = vmatpush.bf16.msra.mxu0 0
      %1390 = vmatpush.bf16.msra.mxu0 0
      %1391 = vmatpush.bf16.msra.mxu0 0
      %1392 = vmatpush.bf16.msra.mxu0 0
      %1393 = vmatpush.bf16.msra.mxu0 %v1381
      %1394 = vmatpush.bf16.msra.mxu0 %v1380
      %1395 = vmatmul.bf16.gmra.mxu0 %v1385
      %v1396 = vpop.f32.mrf.mxu0
      %v1397 = vadd.f32 %v1371, %v1396
      %v1398 = vpop.f32.mrf.mxu0
      %1399 = vdwg.mxu0
      %v1400 = vadd.f32 %v914, %v1397
      %v1401 = vsel %vm314, %v1400, 0.0
      %1402 = vadd.xlane.f32.xlu0 %v1401
      %v1403 = vpop.xlane.xlu0 %1402
      %v1404 = vmul.f32 %v1403, %v324
      %v1405 = vsub.f32 %v1400, %v1404
      %v1406 = vmul.f32 %v1405, %v1405
      %v1407 = vsel %vm314, %v1406, 0.0
      %1408 = vadd.xlane.f32.xlu0 %v1407
      %v1409 = vpop.xlane.xlu0 %1408
      %v1410 = vmul.f32 %v1409, %v324
      %v1411 = vadd.f32 %v1410, 1e-06
      %v1412 = vrsqrt.pop %v1411
      %v1413 = vmul.f32 %v1412, %v1411
      %v1414 = vmul.f32 %v1413, %v1412
      %v1415 = vmul.f32 0.5, %v1414
      %v1416 = vsub.f32 1.5, %v1415
      %v1417 = vmul.f32 %v1412, %v1416
      %vm1418 = vweird.f32 %v1411
      %vm1419 = vweird.f32 %v1412
      %vm1420 = vmor %vm1418, %vm1419
      %v1421 = vsel %vm1420, %v1412, %v1417
      %v1422 = vmul.f32 %v1405, %v1421
      %v1423 = vperm.slane %v344, 4
      %v1424 = vmul.f32 %v1422, %v1423
      %v1425 = vperm.slane %v313, 3
      %v1426 = vadd.f32 %v1424, %v1425
      %v1427 = vpack.c.bf16 %v1426, %v1426
      %v1428 = vld [vmem:[%s5] sm:$0xf]
      %v1429 = vld [vmem:[%s5 + $0x4] sm:$0xf]
      %v1430 = vld [vmem:[%s5 + $0x8] sm:$0xf]
      %v1431 = vld [vmem:[%s5 + $0xc] sm:$0xf]
      %v1432 = vld [vmem:[%s6] sm:$0x1]
      %v1434 = vperm.slane %v1432, 0
      %v1440 = vunpack.c.l.b16 %v1428
      %v1441 = vunpack.c.l.b16 %v1429
      %v1442 = vunpack.c.l.b16 %v1430
      %v1443 = vunpack.c.l.b16 %v1431
      %v1444 = vpack.c.b16 %v1441, %v1440
      %v1445 = vpack.c.b16 %v1443, %v1442
      %v1449 = vsel %vm314, %v1427, 0
      %1451 = vmatpush.bf16.msra.mxu0 0
      %1452 = vmatpush.bf16.msra.mxu0 0
      %1453 = vmatpush.bf16.msra.mxu0 0
      %1454 = vmatpush.bf16.msra.mxu0 0
      %1455 = vmatpush.bf16.msra.mxu0 0
      %1456 = vmatpush.bf16.msra.mxu0 0
      %1457 = vmatpush.bf16.msra.mxu0 %v1445
      %1458 = vmatpush.bf16.msra.mxu0 %v1444
      %1459 = vmatmul.bf16.gmra.mxu0 %v1449
      %v1460 = vpop.f32.mrf.mxu0
      %v1461 = vadd.f32 %v1434, %v1460
      %v1462 = vpop.f32.mrf.mxu0
      %1463 = vdwg.mxu0
      %v1464 = vmul.f32 %v1461, 0.5
      %v1465 = vmul.f32 %v1461, 0.044715
      %v1466 = vmul.f32 %v1465, %v1461
      %v1467 = vmul.f32 %v1466, %v1461
      %v1468 = vadd.f32 %v1461, %v1467
      %v1469 = vmul.f32 %v1468, 0.7978846
      %v1470 = vtanh.pop %v1469
      %v1471 = vadd.f32 %v1470, 1.0
      %v1472 = vmul.f32 %v1464, %v1471
      %v1473 = vpack.c.bf16 %v1472, %v1472
      %v1474 = vld [vmem:[%s4 + $0xa0] sm:$0xf]
      %v1475 = vld [vmem:[%s4 + $0xa4] sm:$0xf]
      %v1476 = vld [vmem:[%s4 + $0xa8] sm:$0xf]
      %v1477 = vld [vmem:[%s4 + $0xac] sm:$0xf]
      %v1478 = vld [vmem:[%s4 + $0xb0] sm:$0xf]
      %v1479 = vld [vmem:[%s4 + $0xb4] sm:$0xf]
      %v1480 = vld [vmem:[%s4 + $0xb8] sm:$0xf]
      %v1481 = vld [vmem:[%s4 + $0xbc] sm:$0xf]
      %v1482 = vld [vmem:[%s3 + $0x28] sm:$0x1]
      %v1483 = vperm.slane %v1482, 0
      %v1492 = vunpack.c.l.b16 %v1474
      %v1493 = vunpack.c.l.b16 %v1475
      %v1494 = vunpack.c.l.b16 %v1476
      %v1495 = vunpack.c.l.b16 %v1477
      %v1496 = vunpack.c.l.b16 %v1478
      %v1497 = vunpack.c.l.b16 %v1479
      %v1498 = vunpack.c.l.b16 %v1480
      %v1499 = vunpack.c.l.b16 %v1481
      %v1500 = vpack.c.b16 %v1493, %v1492
      %v1501 = vpack.c.b16 %v1495, %v1494
      %v1502 = vpack.c.b16 %v1497, %v1496
      %v1503 = vpack.c.b16 %v1499, %v1498
      %vm1508 = vcmask 523264
      %v1510 = vsel %vm1508, %v1473, 0
      %1512 = vmatpush.bf16.msra.mxu0 0
      %1513 = vmatpush.bf16.msra.mxu0 0
      %1514 = vmatpush.bf16.msra.mxu0 0
      %1515 = vmatpush.bf16.msra.mxu0 0
      %1516 = vmatpush.bf16.msra.mxu0 %v1503
      %1517 = vmatpush.bf16.msra.mxu0 %v1502
      %1518 = vmatpush.bf16.msra.mxu0 %v1501
      %1519 = vmatpush.bf16.msra.mxu0 %v1500
      %1520 = vmatmul.bf16.gmra.mxu0 %v1510
      %v1521 = vpop.f32.mrf.mxu0
      %v1522 = vadd.f32 %v1483, %v1521
      %v1523 = vpop.f32.mrf.mxu0
      %1524 = vdwg.mxu0
      %v1525 = vperm.slane %v313, 5
      %v1526 = vmul.f32 %v1522, %v1525
      %v1527 = vadd.f32 %v1400, %v1526
      %v1529 = vrot.slane %v1527, 1
      %1530 = vrot.lane.b32.xlu0 %v1529, 32
      %v1531 = vpop.permute.xlu0 %1530
      %v1533 = vrot.slane %v1527, 2
      %1534 = vrot.lane.b32.xlu0 %v1533, 64
      %v1535 = vpop.permute.xlu0 %1534
      %v1537 = vrot.slane %v1527, 3
      %1538 = vrot.lane.b32.xlu0 %v1537, 96
      %v1539 = vpop.permute.xlu0 %1538
      %v1541 = vrot.slane %v1527, 4
      %v1543 = vrot.slane %v1527, 5
      %1544 = vrot.lane.b32.xlu0 %v1543, 32
      %v1545 = vpop.permute.xlu0 %1544
      %v1547 = vrot.slane %v1527, 6
      %1548 = vrot.lane.b32.xlu0 %v1547, 64
      %v1549 = vpop.permute.xlu0 %1548
      %v1551 = vrot.slane %v1527, 7
      %1552 = vrot.lane.b32.xlu0 %v1551, 96
      %v1553 = vpop.permute.xlu0 %1552
      %v1555 = vsel %vm314, %v1527, %v1531
      %v1556 = vsel %vm1508, %v1555, %v1535
      %vm1557 = vcmask 785408
      %v1558 = vsel %vm1557, %v1556, %v1539
      %v1559 = vsel %vm314, %v1541, %v1545
      %v1560 = vsel %vm1508, %v1559, %v1549
      %v1561 = vsel %vm1557, %v1560, %v1553
      %v1564 = vrot.slane %v1561, 7
      %vm1565 = vcmask 1040384
      %v1566 = vsel %vm1565, %v1558, %v1564
      %v1568 = vlaneseq
      %vm1569 = vcmp.ge.s32.totalorder %v1568, 0
      %vm1570 = vcmp.lt.s32.totalorder %v1568, 256
      %vm1571 = vmand %vm1569, %vm1570
      %1572 = vst.msk [vmem:[%s307] sm:$0x3] %vm1571, %v1566
      %p1573 = scmp.lt.s32.totalorder %s18, 1
      %s1574 = scalar_select %p1573, %s18, 1
      %s1575 = smul.addr %s1574, 2
      %s1576 = scalar_lea.vmem %s7, %s1575
      // Predicated region
      $region49: #{wan_attention_block_pallas.1} parent=47 // pred_check
        %p1577 = pneg %p198
      $region50: #{wan_attention_block_pallas.1} parent=47 // pred_check_branch
        %1579 = sbr.rel (%p1577) target = $region52
      $region51: #{wan_attention_block_pallas.1} parent=47 // pred_region
        _
      $region52: #{wan_attention_block_pallas.1} parent=47 // pred_fallthru
        _
    $region48: #{wan_attention_block_pallas.1} parent=5 // pred_fallthru
      _
    %p1580 = scmp.le.s32.totalorder 2, %s13
    // Predicated region
    $region53: #{wan_attention_block_pallas.1} parent=5 // pred_check
      %p1581 = pneg %p1580
    $region54: #{wan_attention_block_pallas.1} parent=5 // pred_check_branch
      %1583 = sbr.rel (%p1581) target = $region56
    $region55: #{wan_attention_block_pallas.1} parent=5 // pred_region
      %s1584 = ssub.s32 %s13, 2
      // Predicated region
      $region57: #{wan_attention_block_pallas.1} parent=55 // pred_check
        %p1585 = pneg %p204
      $region58: #{wan_attention_block_pallas.1} parent=55 // pred_check_branch
        %1587 = sbr.rel (%p1585) target = $region60
      $region59: #{wan_attention_block_pallas.1} parent=55 // pred_region
        %p1588 = scmp.lt.s32.totalorder %s19, 1
        %s1589 = scalar_select %p1588, %s19, 1
        %s1590 = smul.addr %s1589, 2
        %s1591 = scalar_lea.vmem %s7, %s1590
      $region60: #{wan_attention_block_pallas.1} parent=55 // pred_fallthru
        _
    $region56: #{wan_attention_block_pallas.1} parent=5 // pred_fallthru
      _
  $region6: #{wan_attention_block_pallas.1} parent=0 // loop_footer
    %s17 = sadd.s32 1, %s13
  $region7: #{wan_attention_block_pallas.1} parent=0 // loop_footer_branch
    %12 = sbr.rel target = $region3
  $region8: #{wan_attention_block_pallas.1} parent=0 // loop_exit
    _

</llo_original>
